<compile_context>
chip_gen: v7x
topology: tpu7x:2x2x1
jax: 0.10.0
libtpu: 0.0.40
codegen_flags: <defaults>
</compile_context>

<pallas_src>
import functools

import numpy as np
import jax
import jax.numpy as jnp
from jax.experimental import pallas as pl
from jax.experimental.pallas import tpu as pltpu

_BN_EPS = 1e-5


# ----------------------------------------------------------------------------
# Parameters (mirroring a freshly constructed PyTorch RNConvBlock)
# ----------------------------------------------------------------------------
def init_params(key, n_inpch, cfg):
    params = []
    cin = n_inpch
    for (ksize, cout) in cfg:
        key, k1, k2 = jax.random.split(key, 3)
        fan_in = cin * ksize * ksize
        bound = 1.0 / (fan_in ** 0.5)
        w = jax.random.uniform(k1, (ksize, ksize, cin, cout), jnp.float32, -bound, bound)
        # Conv2d has a bias, but BN's batch-mean subtraction cancels any per-channel
        # constant exactly, so the kernel never loads it.
        b = jax.random.uniform(k2, (cout,), jnp.float32, -bound, bound)
        gamma = jnp.ones((cout,), jnp.float32)
        beta = jnp.zeros((cout,), jnp.float32)
        params.append((w, b, gamma, beta))
        cin = cout
    return params


# ----------------------------------------------------------------------------
# Constant preparation (outside the hot path)
# ----------------------------------------------------------------------------
def _toeplitz_wcat(w, W):
    """(K,K,Cin,Cout) conv weight -> (W*Cin, K*W*Cout) bf16 block-Toeplitz matrix.
    Output-lane block kh implements all kw taps (+ W-direction zero padding) of row-tap kh."""
    w = np.asarray(w, np.float32)
    K, _, cin, cout = w.shape
    pad = K // 2
    toep = np.zeros((K, W, cin, W, cout), np.float32)      # (kh, w_in, ci, w_out, co)
    for kh in range(K):
        for kw in range(K):
            dw = kw - pad
            for w_out in range(W):
                w_in = w_out + dw
                if 0 <= w_in < W:
                    toep[kh, w_in, :, w_out, :] = w[kh, kw]
    wcat = toep.reshape(K, W * cin, W * cout).transpose(1, 0, 2).reshape(W * cin, K * W * cout)
    return jnp.asarray(wcat, dtype=jnp.bfloat16)


def _selectors(wc, c):
    """0/1 maps between the (w*C + c) lane packing and channels: sel (WC,C), selT (C,WC)."""
    lane = np.arange(wc)[:, None]
    ch = np.arange(c)[None, :]
    sel = (lane % c == ch).astype(np.float32)
    return jnp.asarray(sel), jnp.asarray(sel.T)


def _row_shift_matrix(N, H, K):
    """(N*H, K*N*H) 0/1 matrix: block kh routes input row r + (kh - pad) to output row r,
    with zeros across image boundaries (H-direction 'same' padding)."""
    NH = N * H
    pad = K // 2
    r = np.arange(NH)[:, None]
    s = np.arange(NH)[None, :]
    blocks = []
    for kh in range(K):
        dh = kh - pad
        hit = (s == r + dh) & ((r % H) + dh >= 0) & ((r % H) + dh < H)
        blocks.append(hit.astype(np.float32))
    return jnp.asarray(np.concatenate(blocks, axis=1))


def prepare(params, N, H, W):
    """Static plan + ordered tuple of constant kernel inputs (weights + selectors + shifts)."""
    layer_meta = tuple((int(w.shape[0]), int(w.shape[2]), int(w.shape[3]))
                       for (w, _b, _g, _be) in params)
    arrays = []
    for (w, _b, gamma, beta) in params:
        cout = int(w.shape[3])
        arrays.append(_toeplitz_wcat(w, W))
        arrays.append(jnp.reshape(gamma, (1, cout)).astype(jnp.float32))
        arrays.append(jnp.reshape(beta, (1, cout)).astype(jnp.float32))

    sel_keys = []
    for (_k, _cin, cout) in layer_meta:          # dedup: layers 1 & 2 share (128, 8)
        key = (W * cout, cout)
        if key not in sel_keys:
            sel_keys.append(key)
    for (wc, c) in sel_keys:
        sel, selT = _selectors(wc, c)
        arrays.append(sel)
        arrays.append(selT)

    s2_keys = []
    for (k, _cin, _cout) in layer_meta:          # dedup: both 3x3 layers share one matrix
        if k > 1 and k not in s2_keys:
            s2_keys.append(k)
    for k in s2_keys:
        arrays.append(_row_shift_matrix(N, H, k))

    plan = (layer_meta, tuple(sel_keys), tuple(s2_keys))
    return plan, tuple(arrays)


# ----------------------------------------------------------------------------
# In-kernel BatchNorm (training-mode batch stats) + optional fused ReLU.
# Two selector matmuls per layer (stacked 2-row operands), everything in f32.
# ----------------------------------------------------------------------------
def _bn_relu(acc, gamma, beta, sel, selT, *, cnt, relu, eps, row1_mask):
    _, wc = acc.shape
    c = gamma.shape[-1]
    m_wc = row1_mask((2, wc))        # bool, True on row 1
    m_c = row1_mask((2, c))

    # Per-lane sums (XLU), stacked -> ONE (2,WC)@(WC,C) matmul gives [mean; E[x^2]].
    s1 = jnp.sum(acc, axis=0, keepdims=True)
    s2 = jnp.sum(acc * acc, axis=0, keepdims=True)
    st = jnp.where(m_wc, s2, s1)                                              # (2, WC)
    stats = jnp.dot(st, sel, preferred_element_type=jnp.float32) * (1.0 / cnt)  # (2, C)
    mean = jnp.sum(jnp.where(m_c, 0.0, stats), axis=0, keepdims=True)         # (1, C)
    ex2 = jnp.sum(jnp.where(m_c, stats, 0.0), axis=0, keepdims=True)
    var = jnp.maximum(ex2 - mean * mean, 0.0)    # single-pass biased batch variance

    scale = gamma * jax.lax.rsqrt(var + eps)                                  # (1, C)
    shift = beta - mean * scale
    ss = jnp.where(m_c, shift, scale)                                         # (2, C)
    ss_l = jnp.dot(ss, selT, preferred_element_type=jnp.float32)              # (2, WC)
    scale_l = jnp.sum(jnp.where(m_wc, 0.0, ss_l), axis=0, keepdims=True)      # (1, WC)
    shift_l = jnp.sum(jnp.where(m_wc, ss_l, 0.0), axis=0, keepdims=True)

    y = acc * scale_l + shift_l
    return jnp.maximum(y, 0.0) if relu else y


# ----------------------------------------------------------------------------
# Fused kernel factory
# ----------------------------------------------------------------------------
def _make_fused_kernel(N, H, W, plan, eps):
    layer_meta, sel_keys, s2_keys = plan
    n_layers = len(layer_meta)
    NH = N * H

    def kernel(*refs):
        idx = 0
        x_ref = refs[idx]; idx += 1
        layer_refs = []
        for _ in range(n_layers):
            layer_refs.append(refs[idx:idx + 3]); idx += 3
        sel_refs = {}
        for key in sel_keys:
            sel_refs[key] = (refs[idx], refs[idx + 1]); idx += 2
        s2_refs = {}
        for k in s2_keys:
            s2_refs[k] = refs[idx]; idx += 1
        o_ref = refs[idx]

        # Trace-time cache so layers sharing a shape reuse one iota/where row mask.
        mask_cache = {}

        def row1_mask(shape):
            if shape not in mask_cache:
                mask_cache[shape] = jax.lax.broadcasted_iota(jnp.int32, shape, 0) == 1
            return mask_cache[shape]

        # Current activation: rows = (n*H + h), lanes = (w*C + c).  Stays in VMEM/vregs.
        cur = x_ref[...].astype(jnp.float32)
        for i, (ksize, _cin, cout) in enumerate(layer_meta):
            wcout = W * cout
            wcat_ref, gamma_ref, beta_ref = layer_refs[i]

            # All kw taps + W padding folded into one bf16 matmul; the K row-taps sit
            # side by side in the output lanes: (N*H, K*W*Cout), f32 accumulation.
            z = jnp.dot(cur.astype(jnp.bfloat16), wcat_ref[...],
                        preferred_element_type=jnp.float32)

            if ksize > 1:
                # kh tap-sum + H-direction 'same' padding as ONE small matmul against a
                # precomputed 0/1 row-shift matrix (replaces padded scratch / rolls).
                # Lane slices are 128-aligned and the sublane concat is 8-aligned, so the
                # rearrangement is pure vreg placement.
                zs = jnp.concatenate(
                    [z[:, t * wcout:(t + 1) * wcout] for t in range(ksize)], axis=0)
                acc = jnp.dot(s2_refs[ksize][...], zs,
                              preferred_element_type=jnp.float32)     # (N*H, W*Cout)
            else:
                acc = z                                               # 1x1 conv

            sel_ref, selT_ref = sel_refs[(wcout, cout)]
            cur = _bn_relu(acc, gamma_ref[...], beta_ref[...], sel_ref[...], selT_ref[...],
                           cnt=float(NH * W), relu=(i < n_layers - 1), eps=eps,
                           row1_mask=row1_mask)

        o_ref[...] = cur.astype(o_ref.dtype)

    return kernel


# ----------------------------------------------------------------------------
# Forward pass (NCHW in / NCHW out, PyTorch convention)
# ----------------------------------------------------------------------------
@functools.partial(jax.jit, static_argnames=("plan",))
def rn_conv_block(x_nchw, const_arrays, *, plan):
    N, Cin, H, W = x_nchw.shape
    layer_meta = plan[0]
    cout_last = layer_meta[-1][2]

    # Boundary layout change NCHW -> lane-packed (N*H, W*C).  In a multi-block network this
    # layout would stay resident across blocks instead of being converted per call.
    x2d = jnp.transpose(x_nchw, (0, 2, 3, 1)).reshape(N * H, W * Cin)

    kernel = _make_fused_kernel(N, H, W, plan, _BN_EPS)
    vmem = pl.BlockSpec(memory_space=pltpu.MemorySpace.VMEM)
    out2d = pl.pallas_call(
        kernel,
        out_shape=jax.ShapeDtypeStruct((N * H, W * cout_last), x_nchw.dtype),
        in_specs=[vmem] * (1 + len(const_arrays)),
        out_specs=vmem,
    )(x2d, *const_arrays)

    # TODO(synk): for large N*H / channels, switch to an N*H-tiled "parallel" grid (halo via an
    # extended row-shift matrix) with a two-pass BN; at this size everything fits one TC's VMEM.
    return jnp.transpose(out2d.reshape(N, H, W, cout_last), (0, 3, 1, 2))


# ----------------------------------------------------------------------------
# Pure-JAX reference.  Uses the same bf16-quantized weights as the kernel (the quantization is
# part of the kernel design); activations / BN stay f32, conv bias included (BN cancels it).
# ----------------------------------------------------------------------------
def _reference(x, params, cfg):
    y = x
    n_layers = len(cfg)
    for i, ((ksize, cout), (w, b, gamma, beta)) in enumerate(zip(cfg, params)):
        pad = ksize // 2
        w_q = w.astype(jnp.bfloat16).astype(jnp.float32)
        y = jax.lax.conv_general_dilated(
            y, w_q, window_strides=(1, 1), padding=[(pad, pad), (pad, pad)],
            dimension_numbers=("NCHW", "HWIO", "NCHW"),
            precision=jax.lax.Precision.HIGHEST)
        y = y + b.reshape(1, cout, 1, 1)
        mean = jnp.mean(y, axis=(0, 2, 3), keepdims=True)
        var = jnp.mean((y - mean) ** 2, axis=(0, 2, 3), keepdims=True)
        y = (y - mean) * jax.lax.rsqrt(var + _BN_EPS)
        y = y * gamma.reshape(1, cout, 1, 1) + beta.reshape(1, cout, 1, 1)
        if i < n_layers - 1:
            y = jnp.maximum(y, 0.0)
    return y


if __name__ == "__main__":
    key = jax.random.PRNGKey(0)
    k_x, k_p = jax.random.split(key)

    # cfg = [(ksize, n_otpch), ...] as in the PyTorch module
    n_inpch = 4
    cfg = ((3, 8), (3, 8), (1, 4))
    x = jax.random.normal(k_x, (2, n_inpch, 16, 16), jnp.float32)   # NCHW

    params = init_params(k_p, n_inpch, cfg)
    N, _, H, W = x.shape
    plan, const_arrays = prepare(params, N, H, W)

    out = rn_conv_block(x, const_arrays, plan=plan)
    jax.block_until_ready(out)

    assert out.shape == (2, cfg[-1][1], 16, 16)

    ref = _reference(x, params, cfg)
    err = jnp.abs(out - ref)
    max_err = float(jnp.max(err))
    rms_err = float(jnp.sqrt(jnp.mean(err * err)))
    # Kernel computes the convs with bf16 inputs (f32 accumulation); tolerances are sized for
    # bf16 activation rounding over 3 BN-normalized layers while still catching structural bugs.
    assert max_err < 5e-2 and rms_err < 1.5e-2, f"mismatch: max={max_err:.4g} rms={rms_err:.4g}"
    print("KERNEL_OK")
</pallas_src>

<mosaic_0001>
module attributes {stable_mosaic.version = 11 : i64} {
  func.func @kernel(%arg0: memref<32x64xf32, #tpu.memory_space<vmem>>, %arg1: memref<64x384xbf16, #tpu.memory_space<vmem>>, %arg2: memref<1x8xf32, #tpu.memory_space<vmem>>, %arg3: memref<1x8xf32, #tpu.memory_space<vmem>>, %arg4: memref<128x384xbf16, #tpu.memory_space<vmem>>, %arg5: memref<1x8xf32, #tpu.memory_space<vmem>>, %arg6: memref<1x8xf32, #tpu.memory_space<vmem>>, %arg7: memref<128x64xbf16, #tpu.memory_space<vmem>>, %arg8: memref<1x4xf32, #tpu.memory_space<vmem>>, %arg9: memref<1x4xf32, #tpu.memory_space<vmem>>, %arg10: memref<128x8xf32, #tpu.memory_space<vmem>>, %arg11: memref<8x128xf32, #tpu.memory_space<vmem>>, %arg12: memref<64x4xf32, #tpu.memory_space<vmem>>, %arg13: memref<4x64xf32, #tpu.memory_space<vmem>>, %arg14: memref<32x96xf32, #tpu.memory_space<vmem>>, %arg15: memref<32x64xf32, #tpu.memory_space<vmem>>) attributes {dimension_semantics = [], scalar_prefetch = 0 : i64, scratch_operands = 0 : i64, tpu.core_type = #tpu.core_type<tc>} {
    %c0 = arith.constant 0 : index
    %c0_0 = arith.constant 0 : index
    %0 = vector.load %arg0[%c0, %c0_0] : memref<32x64xf32, #tpu.memory_space<vmem>>, vector<32x64xf32>
    %1 = arith.truncf %0 : vector<32x64xf32> to vector<32x64xbf16>
    %c0_1 = arith.constant 0 : index
    %c0_2 = arith.constant 0 : index
    %2 = vector.load %arg1[%c0_1, %c0_2] : memref<64x384xbf16, #tpu.memory_space<vmem>>, vector<64x384xbf16>
    %cst = arith.constant dense<0.000000e+00> : vector<32x384xf32>
    %3 = tpu.matmul %1, %2, %cst {dimension_numbers = #tpu.dot_dimension_numbers<[1], [0], [0], [1], [0, 0, 1, 1], [], []>} : vector<32x64xbf16>, vector<64x384xbf16>, vector<32x384xf32> -> vector<32x384xf32>
    %4 = vector.extract_strided_slice %3 {offsets = [0, 0], sizes = [32, 128], strides = [1, 1]} : vector<32x384xf32> to vector<32x128xf32>
    %5 = vector.extract_strided_slice %3 {offsets = [0, 128], sizes = [32, 128], strides = [1, 1]} : vector<32x384xf32> to vector<32x128xf32>
    %6 = vector.extract_strided_slice %3 {offsets = [0, 256], sizes = [32, 128], strides = [1, 1]} : vector<32x384xf32> to vector<32x128xf32>
    %7 = tpu.concatenate %4, %5, %6 in 0 : vector<32x128xf32>, vector<32x128xf32>, vector<32x128xf32> -> vector<96x128xf32>
    %c0_3 = arith.constant 0 : index
    %c0_4 = arith.constant 0 : index
    %8 = vector.load %arg14[%c0_3, %c0_4] : memref<32x96xf32, #tpu.memory_space<vmem>>, vector<32x96xf32>
    %cst_5 = arith.constant dense<0.000000e+00> : vector<32x128xf32>
    %9 = tpu.matmul %8, %7, %cst_5 {dimension_numbers = #tpu.dot_dimension_numbers<[1], [0], [0], [1], [0, 0, 1, 1], [], []>} : vector<32x96xf32>, vector<96x128xf32>, vector<32x128xf32> -> vector<32x128xf32>
    %c0_6 = arith.constant 0 : index
    %c0_7 = arith.constant 0 : index
    %10 = vector.load %arg2[%c0_6, %c0_7] : memref<1x8xf32, #tpu.memory_space<vmem>>, vector<1x8xf32>
    %c0_8 = arith.constant 0 : index
    %c0_9 = arith.constant 0 : index
    %11 = vector.load %arg3[%c0_8, %c0_9] : memref<1x8xf32, #tpu.memory_space<vmem>>, vector<1x8xf32>
    %c0_10 = arith.constant 0 : index
    %c0_11 = arith.constant 0 : index
    %12 = vector.load %arg10[%c0_10, %c0_11] : memref<128x8xf32, #tpu.memory_space<vmem>>, vector<128x8xf32>
    %c0_12 = arith.constant 0 : index
    %c0_13 = arith.constant 0 : index
    %13 = vector.load %arg11[%c0_12, %c0_13] : memref<8x128xf32, #tpu.memory_space<vmem>>, vector<8x128xf32>
    %14 = tpu.iota {dimensions = array<i32: 0>} : vector<2x128xi32>
    %c1_i32 = arith.constant 1 : i32
    %15 = vector.broadcast %c1_i32 : i32 to vector<2x128xi32>
    %16 = arith.cmpi eq, %14, %15 : vector<2x128xi32>
    %17 = tpu.iota {dimensions = array<i32: 0>} : vector<2x8xi32>
    %c1_i32_14 = arith.constant 1 : i32
    %18 = vector.broadcast %c1_i32_14 : i32 to vector<2x8xi32>
    %19 = arith.cmpi eq, %17, %18 : vector<2x8xi32>
    %cst_15 = arith.constant dense<0.000000e+00> : vector<128xf32>
    %20 = vector.multi_reduction <add>, %9, %cst_15 [0] : vector<32x128xf32> to vector<128xf32>
    %21 = vector.shape_cast %20 : vector<128xf32> to vector<1x128xf32>
    %22 = arith.mulf %9, %9 : vector<32x128xf32>
    %cst_16 = arith.constant dense<0.000000e+00> : vector<128xf32>
    %23 = vector.multi_reduction <add>, %22, %cst_16 [0] : vector<32x128xf32> to vector<128xf32>
    %24 = vector.shape_cast %23 : vector<128xf32> to vector<1x128xf32>
    %25 = vector.shape_cast %24 : vector<1x128xf32> to vector<1x128xf32>
    %26 = vector.broadcast %25 : vector<1x128xf32> to vector<2x128xf32>
    %27 = vector.shape_cast %21 : vector<1x128xf32> to vector<1x128xf32>
    %28 = vector.broadcast %27 : vector<1x128xf32> to vector<2x128xf32>
    %29 = arith.select %16, %26, %28 : vector<2x128xi1>, vector<2x128xf32>
    %cst_17 = arith.constant dense<0.000000e+00> : vector<2x8xf32>
    %30 = tpu.matmul %29, %12, %cst_17 {dimension_numbers = #tpu.dot_dimension_numbers<[1], [0], [0], [1], [0, 0, 1, 1], [], []>} : vector<2x128xf32>, vector<128x8xf32>, vector<2x8xf32> -> vector<2x8xf32>
    %cst_18 = arith.constant 0.001953125 : f32
    %31 = vector.broadcast %cst_18 : f32 to vector<2x8xf32>
    %32 = arith.mulf %30, %31 : vector<2x8xf32>
    %cst_19 = arith.constant 0.000000e+00 : f32
    %33 = vector.broadcast %cst_19 : f32 to vector<2x8xf32>
    %34 = arith.select %19, %33, %32 : vector<2x8xi1>, vector<2x8xf32>
    %cst_20 = arith.constant dense<0.000000e+00> : vector<8xf32>
    %35 = vector.multi_reduction <add>, %34, %cst_20 [0] : vector<2x8xf32> to vector<8xf32>
    %36 = vector.shape_cast %35 : vector<8xf32> to vector<1x8xf32>
    %cst_21 = arith.constant 0.000000e+00 : f32
    %37 = vector.broadcast %cst_21 : f32 to vector<2x8xf32>
    %38 = arith.select %19, %32, %37 : vector<2x8xi1>, vector<2x8xf32>
    %cst_22 = arith.constant dense<0.000000e+00> : vector<8xf32>
    %39 = vector.multi_reduction <add>, %38, %cst_22 [0] : vector<2x8xf32> to vector<8xf32>
    %40 = vector.shape_cast %39 : vector<8xf32> to vector<1x8xf32>
    %41 = arith.mulf %36, %36 : vector<1x8xf32>
    %42 = arith.subf %40, %41 : vector<1x8xf32>
    %cst_23 = arith.constant 0.000000e+00 : f32
    %43 = vector.broadcast %cst_23 : f32 to vector<1x8xf32>
    %44 = arith.maximumf %42, %43 : vector<1x8xf32>
    %cst_24 = arith.constant 9.99999974E-6 : f32
    %45 = vector.broadcast %cst_24 : f32 to vector<1x8xf32>
    %46 = arith.addf %44, %45 : vector<1x8xf32>
    %47 = math.rsqrt %46 : vector<1x8xf32>
    %48 = arith.mulf %10, %47 : vector<1x8xf32>
    %49 = arith.mulf %36, %48 : vector<1x8xf32>
    %50 = arith.subf %11, %49 : vector<1x8xf32>
    %51 = vector.shape_cast %50 : vector<1x8xf32> to vector<1x8xf32>
    %52 = vector.broadcast %51 : vector<1x8xf32> to vector<2x8xf32>
    %53 = vector.shape_cast %48 : vector<1x8xf32> to vector<1x8xf32>
    %54 = vector.broadcast %53 : vector<1x8xf32> to vector<2x8xf32>
    %55 = arith.select %19, %52, %54 : vector<2x8xi1>, vector<2x8xf32>
    %cst_25 = arith.constant dense<0.000000e+00> : vector<2x128xf32>
    %56 = tpu.matmul %55, %13, %cst_25 {dimension_numbers = #tpu.dot_dimension_numbers<[1], [0], [0], [1], [0, 0, 1, 1], [], []>} : vector<2x8xf32>, vector<8x128xf32>, vector<2x128xf32> -> vector<2x128xf32>
    %cst_26 = arith.constant 0.000000e+00 : f32
    %57 = vector.broadcast %cst_26 : f32 to vector<2x128xf32>
    %58 = arith.select %16, %57, %56 : vector<2x128xi1>, vector<2x128xf32>
    %cst_27 = arith.constant dense<0.000000e+00> : vector<128xf32>
    %59 = vector.multi_reduction <add>, %58, %cst_27 [0] : vector<2x128xf32> to vector<128xf32>
    %60 = vector.shape_cast %59 : vector<128xf32> to vector<1x128xf32>
    %cst_28 = arith.constant 0.000000e+00 : f32
    %61 = vector.broadcast %cst_28 : f32 to vector<2x128xf32>
    %62 = arith.select %16, %56, %61 : vector<2x128xi1>, vector<2x128xf32>
    %cst_29 = arith.constant dense<0.000000e+00> : vector<128xf32>
    %63 = vector.multi_reduction <add>, %62, %cst_29 [0] : vector<2x128xf32> to vector<128xf32>
    %64 = vector.shape_cast %63 : vector<128xf32> to vector<1x128xf32>
    %65 = vector.broadcast %60 : vector<1x128xf32> to vector<32x128xf32>
    %66 = arith.mulf %9, %65 : vector<32x128xf32>
    %67 = vector.broadcast %64 : vector<1x128xf32> to vector<32x128xf32>
    %68 = arith.addf %66, %67 : vector<32x128xf32>
    %cst_30 = arith.constant 0.000000e+00 : f32
    %69 = vector.broadcast %cst_30 : f32 to vector<32x128xf32>
    %70 = arith.maximumf %68, %69 : vector<32x128xf32>
    %71 = arith.truncf %70 : vector<32x128xf32> to vector<32x128xbf16>
    %c0_31 = arith.constant 0 : index
    %c0_32 = arith.constant 0 : index
    %72 = vector.load %arg4[%c0_31, %c0_32] : memref<128x384xbf16, #tpu.memory_space<vmem>>, vector<128x384xbf16>
    %cst_33 = arith.constant dense<0.000000e+00> : vector<32x384xf32>
    %73 = tpu.matmul %71, %72, %cst_33 {dimension_numbers = #tpu.dot_dimension_numbers<[1], [0], [0], [1], [0, 0, 1, 1], [], []>} : vector<32x128xbf16>, vector<128x384xbf16>, vector<32x384xf32> -> vector<32x384xf32>
    %74 = vector.extract_strided_slice %73 {offsets = [0, 0], sizes = [32, 128], strides = [1, 1]} : vector<32x384xf32> to vector<32x128xf32>
    %75 = vector.extract_strided_slice %73 {offsets = [0, 128], sizes = [32, 128], strides = [1, 1]} : vector<32x384xf32> to vector<32x128xf32>
    %76 = vector.extract_strided_slice %73 {offsets = [0, 256], sizes = [32, 128], strides = [1, 1]} : vector<32x384xf32> to vector<32x128xf32>
    %77 = tpu.concatenate %74, %75, %76 in 0 : vector<32x128xf32>, vector<32x128xf32>, vector<32x128xf32> -> vector<96x128xf32>
    %c0_34 = arith.constant 0 : index
    %c0_35 = arith.constant 0 : index
    %78 = vector.load %arg14[%c0_34, %c0_35] : memref<32x96xf32, #tpu.memory_space<vmem>>, vector<32x96xf32>
    %cst_36 = arith.constant dense<0.000000e+00> : vector<32x128xf32>
    %79 = tpu.matmul %78, %77, %cst_36 {dimension_numbers = #tpu.dot_dimension_numbers<[1], [0], [0], [1], [0, 0, 1, 1], [], []>} : vector<32x96xf32>, vector<96x128xf32>, vector<32x128xf32> -> vector<32x128xf32>
    %c0_37 = arith.constant 0 : index
    %c0_38 = arith.constant 0 : index
    %80 = vector.load %arg5[%c0_37, %c0_38] : memref<1x8xf32, #tpu.memory_space<vmem>>, vector<1x8xf32>
    %c0_39 = arith.constant 0 : index
    %c0_40 = arith.constant 0 : index
    %81 = vector.load %arg6[%c0_39, %c0_40] : memref<1x8xf32, #tpu.memory_space<vmem>>, vector<1x8xf32>
    %c0_41 = arith.constant 0 : index
    %c0_42 = arith.constant 0 : index
    %82 = vector.load %arg10[%c0_41, %c0_42] : memref<128x8xf32, #tpu.memory_space<vmem>>, vector<128x8xf32>
    %c0_43 = arith.constant 0 : index
    %c0_44 = arith.constant 0 : index
    %83 = vector.load %arg11[%c0_43, %c0_44] : memref<8x128xf32, #tpu.memory_space<vmem>>, vector<8x128xf32>
    %cst_45 = arith.constant dense<0.000000e+00> : vector<128xf32>
    %84 = vector.multi_reduction <add>, %79, %cst_45 [0] : vector<32x128xf32> to vector<128xf32>
    %85 = vector.shape_cast %84 : vector<128xf32> to vector<1x128xf32>
    %86 = arith.mulf %79, %79 : vector<32x128xf32>
    %cst_46 = arith.constant dense<0.000000e+00> : vector<128xf32>
    %87 = vector.multi_reduction <add>, %86, %cst_46 [0] : vector<32x128xf32> to vector<128xf32>
    %88 = vector.shape_cast %87 : vector<128xf32> to vector<1x128xf32>
    %89 = vector.shape_cast %88 : vector<1x128xf32> to vector<1x128xf32>
    %90 = vector.broadcast %89 : vector<1x128xf32> to vector<2x128xf32>
    %91 = vector.shape_cast %85 : vector<1x128xf32> to vector<1x128xf32>
    %92 = vector.broadcast %91 : vector<1x128xf32> to vector<2x128xf32>
    %93 = arith.select %16, %90, %92 : vector<2x128xi1>, vector<2x128xf32>
    %cst_47 = arith.constant dense<0.000000e+00> : vector<2x8xf32>
    %94 = tpu.matmul %93, %82, %cst_47 {dimension_numbers = #tpu.dot_dimension_numbers<[1], [0], [0], [1], [0, 0, 1, 1], [], []>} : vector<2x128xf32>, vector<128x8xf32>, vector<2x8xf32> -> vector<2x8xf32>
    %cst_48 = arith.constant 0.001953125 : f32
    %95 = vector.broadcast %cst_48 : f32 to vector<2x8xf32>
    %96 = arith.mulf %94, %95 : vector<2x8xf32>
    %cst_49 = arith.constant 0.000000e+00 : f32
    %97 = vector.broadcast %cst_49 : f32 to vector<2x8xf32>
    %98 = arith.select %19, %97, %96 : vector<2x8xi1>, vector<2x8xf32>
    %cst_50 = arith.constant dense<0.000000e+00> : vector<8xf32>
    %99 = vector.multi_reduction <add>, %98, %cst_50 [0] : vector<2x8xf32> to vector<8xf32>
    %100 = vector.shape_cast %99 : vector<8xf32> to vector<1x8xf32>
    %cst_51 = arith.constant 0.000000e+00 : f32
    %101 = vector.broadcast %cst_51 : f32 to vector<2x8xf32>
    %102 = arith.select %19, %96, %101 : vector<2x8xi1>, vector<2x8xf32>
    %cst_52 = arith.constant dense<0.000000e+00> : vector<8xf32>
    %103 = vector.multi_reduction <add>, %102, %cst_52 [0] : vector<2x8xf32> to vector<8xf32>
    %104 = vector.shape_cast %103 : vector<8xf32> to vector<1x8xf32>
    %105 = arith.mulf %100, %100 : vector<1x8xf32>
    %106 = arith.subf %104, %105 : vector<1x8xf32>
    %cst_53 = arith.constant 0.000000e+00 : f32
    %107 = vector.broadcast %cst_53 : f32 to vector<1x8xf32>
    %108 = arith.maximumf %106, %107 : vector<1x8xf32>
    %cst_54 = arith.constant 9.99999974E-6 : f32
    %109 = vector.broadcast %cst_54 : f32 to vector<1x8xf32>
    %110 = arith.addf %108, %109 : vector<1x8xf32>
    %111 = math.rsqrt %110 : vector<1x8xf32>
    %112 = arith.mulf %80, %111 : vector<1x8xf32>
    %113 = arith.mulf %100, %112 : vector<1x8xf32>
    %114 = arith.subf %81, %113 : vector<1x8xf32>
    %115 = vector.shape_cast %114 : vector<1x8xf32> to vector<1x8xf32>
    %116 = vector.broadcast %115 : vector<1x8xf32> to vector<2x8xf32>
    %117 = vector.shape_cast %112 : vector<1x8xf32> to vector<1x8xf32>
    %118 = vector.broadcast %117 : vector<1x8xf32> to vector<2x8xf32>
    %119 = arith.select %19, %116, %118 : vector<2x8xi1>, vector<2x8xf32>
    %cst_55 = arith.constant dense<0.000000e+00> : vector<2x128xf32>
    %120 = tpu.matmul %119, %83, %cst_55 {dimension_numbers = #tpu.dot_dimension_numbers<[1], [0], [0], [1], [0, 0, 1, 1], [], []>} : vector<2x8xf32>, vector<8x128xf32>, vector<2x128xf32> -> vector<2x128xf32>
    %cst_56 = arith.constant 0.000000e+00 : f32
    %121 = vector.broadcast %cst_56 : f32 to vector<2x128xf32>
    %122 = arith.select %16, %121, %120 : vector<2x128xi1>, vector<2x128xf32>
    %cst_57 = arith.constant dense<0.000000e+00> : vector<128xf32>
    %123 = vector.multi_reduction <add>, %122, %cst_57 [0] : vector<2x128xf32> to vector<128xf32>
    %124 = vector.shape_cast %123 : vector<128xf32> to vector<1x128xf32>
    %cst_58 = arith.constant 0.000000e+00 : f32
    %125 = vector.broadcast %cst_58 : f32 to vector<2x128xf32>
    %126 = arith.select %16, %120, %125 : vector<2x128xi1>, vector<2x128xf32>
    %cst_59 = arith.constant dense<0.000000e+00> : vector<128xf32>
    %127 = vector.multi_reduction <add>, %126, %cst_59 [0] : vector<2x128xf32> to vector<128xf32>
    %128 = vector.shape_cast %127 : vector<128xf32> to vector<1x128xf32>
    %129 = vector.broadcast %124 : vector<1x128xf32> to vector<32x128xf32>
    %130 = arith.mulf %79, %129 : vector<32x128xf32>
    %131 = vector.broadcast %128 : vector<1x128xf32> to vector<32x128xf32>
    %132 = arith.addf %130, %131 : vector<32x128xf32>
    %cst_60 = arith.constant 0.000000e+00 : f32
    %133 = vector.broadcast %cst_60 : f32 to vector<32x128xf32>
    %134 = arith.maximumf %132, %133 : vector<32x128xf32>
    %135 = arith.truncf %134 : vector<32x128xf32> to vector<32x128xbf16>
    %c0_61 = arith.constant 0 : index
    %c0_62 = arith.constant 0 : index
    %136 = vector.load %arg7[%c0_61, %c0_62] : memref<128x64xbf16, #tpu.memory_space<vmem>>, vector<128x64xbf16>
    %cst_63 = arith.constant dense<0.000000e+00> : vector<32x64xf32>
    %137 = tpu.matmul %135, %136, %cst_63 {dimension_numbers = #tpu.dot_dimension_numbers<[1], [0], [0], [1], [0, 0, 1, 1], [], []>} : vector<32x128xbf16>, vector<128x64xbf16>, vector<32x64xf32> -> vector<32x64xf32>
    %c0_64 = arith.constant 0 : index
    %c0_65 = arith.constant 0 : index
    %138 = vector.load %arg8[%c0_64, %c0_65] : memref<1x4xf32, #tpu.memory_space<vmem>>, vector<1x4xf32>
    %c0_66 = arith.constant 0 : index
    %c0_67 = arith.constant 0 : index
    %139 = vector.load %arg9[%c0_66, %c0_67] : memref<1x4xf32, #tpu.memory_space<vmem>>, vector<1x4xf32>
    %c0_68 = arith.constant 0 : index
    %c0_69 = arith.constant 0 : index
    %140 = vector.load %arg12[%c0_68, %c0_69] : memref<64x4xf32, #tpu.memory_space<vmem>>, vector<64x4xf32>
    %c0_70 = arith.constant 0 : index
    %c0_71 = arith.constant 0 : index
    %141 = vector.load %arg13[%c0_70, %c0_71] : memref<4x64xf32, #tpu.memory_space<vmem>>, vector<4x64xf32>
    %142 = tpu.iota {dimensions = array<i32: 0>} : vector<2x64xi32>
    %c1_i32_72 = arith.constant 1 : i32
    %143 = vector.broadcast %c1_i32_72 : i32 to vector<2x64xi32>
    %144 = arith.cmpi eq, %142, %143 : vector<2x64xi32>
    %145 = tpu.iota {dimensions = array<i32: 0>} : vector<2x4xi32>
    %c1_i32_73 = arith.constant 1 : i32
    %146 = vector.broadcast %c1_i32_73 : i32 to vector<2x4xi32>
    %147 = arith.cmpi eq, %145, %146 : vector<2x4xi32>
    %cst_74 = arith.constant dense<0.000000e+00> : vector<64xf32>
    %148 = vector.multi_reduction <add>, %137, %cst_74 [0] : vector<32x64xf32> to vector<64xf32>
    %149 = vector.shape_cast %148 : vector<64xf32> to vector<1x64xf32>
    %150 = arith.mulf %137, %137 : vector<32x64xf32>
    %cst_75 = arith.constant dense<0.000000e+00> : vector<64xf32>
    %151 = vector.multi_reduction <add>, %150, %cst_75 [0] : vector<32x64xf32> to vector<64xf32>
    %152 = vector.shape_cast %151 : vector<64xf32> to vector<1x64xf32>
    %153 = vector.shape_cast %152 : vector<1x64xf32> to vector<1x64xf32>
    %154 = vector.broadcast %153 : vector<1x64xf32> to vector<2x64xf32>
    %155 = vector.shape_cast %149 : vector<1x64xf32> to vector<1x64xf32>
    %156 = vector.broadcast %155 : vector<1x64xf32> to vector<2x64xf32>
    %157 = arith.select %144, %154, %156 : vector<2x64xi1>, vector<2x64xf32>
    %cst_76 = arith.constant dense<0.000000e+00> : vector<2x4xf32>
    %158 = tpu.matmul %157, %140, %cst_76 {dimension_numbers = #tpu.dot_dimension_numbers<[1], [0], [0], [1], [0, 0, 1, 1], [], []>} : vector<2x64xf32>, vector<64x4xf32>, vector<2x4xf32> -> vector<2x4xf32>
    %cst_77 = arith.constant 0.001953125 : f32
    %159 = vector.broadcast %cst_77 : f32 to vector<2x4xf32>
    %160 = arith.mulf %158, %159 : vector<2x4xf32>
    %cst_78 = arith.constant 0.000000e+00 : f32
    %161 = vector.broadcast %cst_78 : f32 to vector<2x4xf32>
    %162 = arith.select %147, %161, %160 : vector<2x4xi1>, vector<2x4xf32>
    %cst_79 = arith.constant dense<0.000000e+00> : vector<4xf32>
    %163 = vector.multi_reduction <add>, %162, %cst_79 [0] : vector<2x4xf32> to vector<4xf32>
    %164 = vector.shape_cast %163 : vector<4xf32> to vector<1x4xf32>
    %cst_80 = arith.constant 0.000000e+00 : f32
    %165 = vector.broadcast %cst_80 : f32 to vector<2x4xf32>
    %166 = arith.select %147, %160, %165 : vector<2x4xi1>, vector<2x4xf32>
    %cst_81 = arith.constant dense<0.000000e+00> : vector<4xf32>
    %167 = vector.multi_reduction <add>, %166, %cst_81 [0] : vector<2x4xf32> to vector<4xf32>
    %168 = vector.shape_cast %167 : vector<4xf32> to vector<1x4xf32>
    %169 = arith.mulf %164, %164 : vector<1x4xf32>
    %170 = arith.subf %168, %169 : vector<1x4xf32>
    %cst_82 = arith.constant 0.000000e+00 : f32
    %171 = vector.broadcast %cst_82 : f32 to vector<1x4xf32>
    %172 = arith.maximumf %170, %171 : vector<1x4xf32>
    %cst_83 = arith.constant 9.99999974E-6 : f32
    %173 = vector.broadcast %cst_83 : f32 to vector<1x4xf32>
    %174 = arith.addf %172, %173 : vector<1x4xf32>
    %175 = math.rsqrt %174 : vector<1x4xf32>
    %176 = arith.mulf %138, %175 : vector<1x4xf32>
    %177 = arith.mulf %164, %176 : vector<1x4xf32>
    %178 = arith.subf %139, %177 : vector<1x4xf32>
    %179 = vector.shape_cast %178 : vector<1x4xf32> to vector<1x4xf32>
    %180 = vector.broadcast %179 : vector<1x4xf32> to vector<2x4xf32>
    %181 = vector.shape_cast %176 : vector<1x4xf32> to vector<1x4xf32>
    %182 = vector.broadcast %181 : vector<1x4xf32> to vector<2x4xf32>
    %183 = arith.select %147, %180, %182 : vector<2x4xi1>, vector<2x4xf32>
    %cst_84 = arith.constant dense<0.000000e+00> : vector<2x64xf32>
    %184 = tpu.matmul %183, %141, %cst_84 {dimension_numbers = #tpu.dot_dimension_numbers<[1], [0], [0], [1], [0, 0, 1, 1], [], []>} : vector<2x4xf32>, vector<4x64xf32>, vector<2x64xf32> -> vector<2x64xf32>
    %cst_85 = arith.constant 0.000000e+00 : f32
    %185 = vector.broadcast %cst_85 : f32 to vector<2x64xf32>
    %186 = arith.select %144, %185, %184 : vector<2x64xi1>, vector<2x64xf32>
    %cst_86 = arith.constant dense<0.000000e+00> : vector<64xf32>
    %187 = vector.multi_reduction <add>, %186, %cst_86 [0] : vector<2x64xf32> to vector<64xf32>
    %188 = vector.shape_cast %187 : vector<64xf32> to vector<1x64xf32>
    %cst_87 = arith.constant 0.000000e+00 : f32
    %189 = vector.broadcast %cst_87 : f32 to vector<2x64xf32>
    %190 = arith.select %144, %184, %189 : vector<2x64xi1>, vector<2x64xf32>
    %cst_88 = arith.constant dense<0.000000e+00> : vector<64xf32>
    %191 = vector.multi_reduction <add>, %190, %cst_88 [0] : vector<2x64xf32> to vector<64xf32>
    %192 = vector.shape_cast %191 : vector<64xf32> to vector<1x64xf32>
    %193 = vector.broadcast %188 : vector<1x64xf32> to vector<32x64xf32>
    %194 = arith.mulf %137, %193 : vector<32x64xf32>
    %195 = vector.broadcast %192 : vector<1x64xf32> to vector<32x64xf32>
    %196 = arith.addf %194, %195 : vector<32x64xf32>
    %c0_89 = arith.constant 0 : index
    %c0_90 = arith.constant 0 : index
    %197 = vector.load %arg15[%c0_89, %c0_90] : memref<32x64xf32, #tpu.memory_space<vmem>>, vector<32x64xf32>
    tpu.vector_store %arg15[%c0_89, %c0_90], %196 {strides = array<i32>} : memref<32x64xf32, #tpu.memory_space<vmem>>, vector<32x64xf32>,
    return
  }
}

</mosaic_0001>

<llo_original>
// kernel: rn_conv_block.1
$region0: #{rn_conv_block.1}
  #allocation0 [shape = 'u32[]', space=smem, size = 0x4, offset = 0x4, fixed_abs, tag = 'smem constant byte address 0x4 - core index']
  #allocation1 [shape = 'u32[144,128]{1,0:T(1,128)}', space=vmem, size = 0x12000, scoped, tag = 'internal scratch']
  %s0 = inlined_call_operand.vmem [shape: f32[32,64], index: 0, kind: input, shape index: {}]
  %s1 = inlined_call_operand.vmem [shape: bf16[64,384], index: 1, kind: input, shape index: {}]
  %s2 = inlined_call_operand.vmem [shape: f32[1,8], index: 2, kind: input, shape index: {}]
  %s3 = inlined_call_operand.vmem [shape: f32[1,8], index: 3, kind: input, shape index: {}]
  %s4 = inlined_call_operand.vmem [shape: bf16[128,384], index: 4, kind: input, shape index: {}]
  %s5 = inlined_call_operand.vmem [shape: f32[1,8], index: 5, kind: input, shape index: {}]
  %s6 = inlined_call_operand.vmem [shape: f32[1,8], index: 6, kind: input, shape index: {}]
  %s7 = inlined_call_operand.vmem [shape: bf16[128,64], index: 7, kind: input, shape index: {}]
  %s8 = inlined_call_operand.vmem [shape: f32[1,4], index: 8, kind: input, shape index: {}]
  %s9 = inlined_call_operand.vmem [shape: f32[1,4], index: 9, kind: input, shape index: {}]
  %s10 = inlined_call_operand.vmem [shape: f32[128,8], index: 10, kind: input, shape index: {}]
  %s11 = inlined_call_operand.vmem [shape: f32[8,128], index: 11, kind: input, shape index: {}]
  %s12 = inlined_call_operand.vmem [shape: f32[64,4], index: 12, kind: input, shape index: {}]
  %s13 = inlined_call_operand.vmem [shape: f32[4,64], index: 13, kind: input, shape index: {}]
  %s14 = inlined_call_operand.vmem [shape: f32[32,96], index: 14, kind: input, shape index: {}]
  %s15 = inlined_call_operand.vmem [shape: f32[32,64], index: 15, kind: output, shape index: {}]
  %s16 = sld [smem:[#allocation0]]
  $region70: #{rn_conv_block.1} parent=0
    _
  %s18 = ssub.s32 1, %s16
  %s19 = scalar_select 0, %s18, %s16
  // Predicated region
  $region2: #{rn_conv_block.1} parent=0 // pred_check
    _
  $region3: #{rn_conv_block.1} parent=0 // pred_check_branch
    %21 = sbr.rel (0) target = $region5
  $region4: #{rn_conv_block.1} parent=0 // pred_region
    _
  $region5: #{rn_conv_block.1} parent=0 // pred_fallthru
    _
  // Predicated region
  $region6: #{rn_conv_block.1} parent=0 // pred_check
    _
  $region7: #{rn_conv_block.1} parent=0 // pred_check_branch
    %23 = sbr.rel (0) target = $region9
  $region8: #{rn_conv_block.1} parent=0 // pred_region
    _
  $region9: #{rn_conv_block.1} parent=0 // pred_fallthru
    _
  // Predicated region
  $region10: #{rn_conv_block.1} parent=0 // pred_check
    _
  $region11: #{rn_conv_block.1} parent=0 // pred_check_branch
    %25 = sbr.rel (0) target = $region13
  $region12: #{rn_conv_block.1} parent=0 // pred_region
    _
  $region13: #{rn_conv_block.1} parent=0 // pred_fallthru
    _
  // Predicated region
  $region14: #{rn_conv_block.1} parent=0 // pred_check
    _
  $region15: #{rn_conv_block.1} parent=0 // pred_check_branch
    %27 = sbr.rel (0) target = $region17
  $region16: #{rn_conv_block.1} parent=0 // pred_region
    _
  $region17: #{rn_conv_block.1} parent=0 // pred_fallthru
    _
  // Predicated region
  $region18: #{rn_conv_block.1} parent=0 // pred_check
    _
  $region19: #{rn_conv_block.1} parent=0 // pred_check_branch
    %29 = sbr.rel (0) target = $region21
  $region20: #{rn_conv_block.1} parent=0 // pred_region
    _
  $region21: #{rn_conv_block.1} parent=0 // pred_fallthru
    _
  // Predicated region
  $region22: #{rn_conv_block.1} parent=0 // pred_check
    _
  $region23: #{rn_conv_block.1} parent=0 // pred_check_branch
    %31 = sbr.rel (0) target = $region25
  $region24: #{rn_conv_block.1} parent=0 // pred_region
    _
  $region25: #{rn_conv_block.1} parent=0 // pred_fallthru
    _
  // Predicated region
  $region26: #{rn_conv_block.1} parent=0 // pred_check
    _
  $region27: #{rn_conv_block.1} parent=0 // pred_check_branch
    %33 = sbr.rel (0) target = $region29
  $region28: #{rn_conv_block.1} parent=0 // pred_region
    _
  $region29: #{rn_conv_block.1} parent=0 // pred_fallthru
    _
  // Predicated region
  $region30: #{rn_conv_block.1} parent=0 // pred_check
    _
  $region31: #{rn_conv_block.1} parent=0 // pred_check_branch
    %35 = sbr.rel (0) target = $region33
  $region32: #{rn_conv_block.1} parent=0 // pred_region
    _
  $region33: #{rn_conv_block.1} parent=0 // pred_fallthru
    _
  // Predicated region
  $region34: #{rn_conv_block.1} parent=0 // pred_check
    _
  $region35: #{rn_conv_block.1} parent=0 // pred_check_branch
    %37 = sbr.rel (0) target = $region37
  $region36: #{rn_conv_block.1} parent=0 // pred_region
    _
  $region37: #{rn_conv_block.1} parent=0 // pred_fallthru
    _
  // Predicated region
  $region38: #{rn_conv_block.1} parent=0 // pred_check
    _
  $region39: #{rn_conv_block.1} parent=0 // pred_check_branch
    %39 = sbr.rel (0) target = $region41
  $region40: #{rn_conv_block.1} parent=0 // pred_region
    _
  $region41: #{rn_conv_block.1} parent=0 // pred_fallthru
    _
  // Predicated region
  $region42: #{rn_conv_block.1} parent=0 // pred_check
    _
  $region43: #{rn_conv_block.1} parent=0 // pred_check_branch
    %41 = sbr.rel (0) target = $region45
  $region44: #{rn_conv_block.1} parent=0 // pred_region
    _
  $region45: #{rn_conv_block.1} parent=0 // pred_fallthru
    _
  // Predicated region
  $region46: #{rn_conv_block.1} parent=0 // pred_check
    _
  $region47: #{rn_conv_block.1} parent=0 // pred_check_branch
    %43 = sbr.rel (0) target = $region49
  $region48: #{rn_conv_block.1} parent=0 // pred_region
    _
  $region49: #{rn_conv_block.1} parent=0 // pred_fallthru
    _
  // Predicated region
  $region50: #{rn_conv_block.1} parent=0 // pred_check
    _
  $region51: #{rn_conv_block.1} parent=0 // pred_check_branch
    %45 = sbr.rel (0) target = $region53
  $region52: #{rn_conv_block.1} parent=0 // pred_region
    _
  $region53: #{rn_conv_block.1} parent=0 // pred_fallthru
    _
  // Predicated region
  $region54: #{rn_conv_block.1} parent=0 // pred_check
    _
  $region55: #{rn_conv_block.1} parent=0 // pred_check_branch
    %47 = sbr.rel (0) target = $region57
  $region56: #{rn_conv_block.1} parent=0 // pred_region
    _
  $region57: #{rn_conv_block.1} parent=0 // pred_fallthru
    _
  // Predicated region
  $region58: #{rn_conv_block.1} parent=0 // pred_check
    _
  $region59: #{rn_conv_block.1} parent=0 // pred_check_branch
    %49 = sbr.rel (0) target = $region61
  $region60: #{rn_conv_block.1} parent=0 // pred_region
    _
  $region61: #{rn_conv_block.1} parent=0 // pred_fallthru
    _
  %v51 = vld [vmem:[%s0] sm:$0xff]
  %v52 = vld [vmem:[%s0 + $0x8] sm:$0xff]
  %v53 = vld [vmem:[%s0 + $0x10] sm:$0xff]
  %v54 = vld [vmem:[%s0 + $0x18] sm:$0xff]
  %v55 = vpack.c.bf16 %v52, %v51
  %v56 = vpack.c.bf16 %v54, %v53
  %v57 = vld [vmem:[%s1] sm:$0xff]
  %v58 = vld [vmem:[%s1 + $0x8] sm:$0xf]
  %v59 = vld [vmem:[%s1 + $0xc] sm:$0xff]
  %v60 = vld [vmem:[%s1 + $0x14] sm:$0xf]
  %v61 = vld [vmem:[%s1 + $0x18] sm:$0xff]
  %v62 = vld [vmem:[%s1 + $0x20] sm:$0xf]
  %v63 = vld [vmem:[%s1 + $0x24] sm:$0xff]
  %v64 = vld [vmem:[%s1 + $0x2c] sm:$0xf]
  %v65 = vld [vmem:[%s1 + $0x30] sm:$0xff]
  %v66 = vld [vmem:[%s1 + $0x38] sm:$0xf]
  %v67 = vld [vmem:[%s1 + $0x3c] sm:$0xff]
  %v68 = vld [vmem:[%s1 + $0x44] sm:$0xf]
  %v69 = vld [vmem:[%s1 + $0x48] sm:$0xff]
  %v70 = vld [vmem:[%s1 + $0x50] sm:$0xf]
  %v71 = vld [vmem:[%s1 + $0x54] sm:$0xff]
  %v72 = vld [vmem:[%s1 + $0x5c] sm:$0xf]
  %v89 = vunpack.c.l.b16 %v57
  %v90 = vunpack.c.h.b16 %v57
  %v91 = vunpack.c.l.b16 %v58
  %v92 = vunpack.c.l.b16 %v59
  %v93 = vunpack.c.h.b16 %v59
  %v94 = vunpack.c.l.b16 %v60
  %v95 = vunpack.c.l.b16 %v61
  %v96 = vunpack.c.h.b16 %v61
  %v97 = vunpack.c.l.b16 %v62
  %v98 = vunpack.c.l.b16 %v63
  %v99 = vunpack.c.h.b16 %v63
  %v100 = vunpack.c.l.b16 %v64
  %v101 = vunpack.c.l.b16 %v65
  %v102 = vunpack.c.h.b16 %v65
  %v103 = vunpack.c.l.b16 %v66
  %v104 = vunpack.c.l.b16 %v67
  %v105 = vunpack.c.h.b16 %v67
  %v106 = vunpack.c.l.b16 %v68
  %v107 = vunpack.c.l.b16 %v69
  %v108 = vunpack.c.h.b16 %v69
  %v109 = vunpack.c.l.b16 %v70
  %v110 = vunpack.c.l.b16 %v71
  %v111 = vunpack.c.h.b16 %v71
  %v112 = vunpack.c.l.b16 %v72
  %v113 = vpack.c.b16 %v92, %v89
  %v114 = vpack.c.b16 %v93, %v90
  %v115 = vpack.c.b16 %v94, %v91
  %v116 = vpack.c.b16 %v98, %v95
  %v117 = vpack.c.b16 %v99, %v96
  %v118 = vpack.c.b16 %v100, %v97
  %v119 = vpack.c.b16 %v104, %v101
  %v120 = vpack.c.b16 %v105, %v102
  %v121 = vpack.c.b16 %v106, %v103
  %v122 = vpack.c.b16 %v110, %v107
  %v123 = vpack.c.b16 %v111, %v108
  %v124 = vpack.c.b16 %v112, %v109
  %vm137 = vcmask 523264
  %v139 = vsel %vm137, %v55, 0
  %v142 = vsel %vm137, %v56, 0
  %144 = vmatprep.subr.bf16.mxu0 %v114
  %145 = vmatpush1.bf16.msra.mxu0 %v113
  %146 = vmatprep.subr.bf16.mxu0 %v117
  %147 = vmatpush1.bf16.msra.mxu0 %v116
  %148 = vmatprep.subr.bf16.mxu0 %v120
  %149 = vmatpush1.bf16.msra.mxu0 %v119
  %150 = vmatprep.subr.bf16.mxu0 %v123
  %151 = vmatpush1.bf16.msra.mxu0 %v122
  %152 = vmatprep.subr.bf16.mxu0 0
  %153 = vmatpush1.bf16.msra.mxu0 0
  %154 = vmatprep.subr.bf16.mxu0 0
  %155 = vmatpush1.bf16.msra.mxu0 0
  %156 = vmatprep.subr.bf16.mxu0 0
  %157 = vmatpush1.bf16.msra.mxu0 0
  %158 = vmatprep.subr.bf16.mxu0 0
  %159 = vmatpush1.bf16.msra.mxu0 0
  %160 = vmatprep.subr.bf16.mxu0 0
  %161 = vmatpush1.bf16.msra.mxu0 0
  %162 = vmatprep.subr.bf16.mxu0 0
  %163 = vmatpush1.bf16.msra.mxu0 0
  %164 = vmatprep.subr.bf16.mxu0 0
  %165 = vmatpush1.bf16.msra.mxu0 0
  %166 = vmatprep.subr.bf16.mxu0 0
  %167 = vmatpush1.bf16.msra.mxu0 0
  %168 = vmatprep.subr.bf16.mxu0 0
  %169 = vmatpush1.bf16.msra.mxu0 0
  %170 = vmatprep.subr.bf16.mxu0 0
  %171 = vmatpush1.bf16.msra.mxu0 0
  %172 = vmatprep.subr.bf16.mxu0 0
  %173 = vmatpush1.bf16.msra.mxu0 0
  %174 = vmatprep.subr.bf16.mxu0 0
  %175 = vmatpush1.bf16.msra.mxu0 0
  %176 = vmatprep.mubr.bf16.mxu0 0
  %177 = vmatmul.mubr.bf16.gmra.mrb[0].mxu0 %v139
  %v178 = vpop.f32.mrb[0].mxu0
  %v179 = vadd.f32 0.0, %v178
  %v180 = vpop.f32.mrb[0].mxu0
  %v181 = vadd.f32 0.0, %v180
  %v182 = vpop.f32.mrb[0].mxu0
  %v183 = vadd.f32 0.0, %v182
  %v184 = vpop.f32.mrb[0].mxu0
  %v185 = vadd.f32 0.0, %v184
  %186 = vmatprep.mubr.bf16.mxu0 0
  %187 = vmatmul.mubr.bf16.gmra.mrb[0].mxu0 %v142
  %v188 = vpop.f32.mrb[0].mxu0
  %v189 = vadd.f32 0.0, %v188
  %v190 = vpop.f32.mrb[0].mxu0
  %v191 = vadd.f32 0.0, %v190
  %v192 = vpop.f32.mrb[0].mxu0
  %v193 = vadd.f32 0.0, %v192
  %v194 = vpop.f32.mrb[0].mxu0
  %v195 = vadd.f32 0.0, %v194
  %196 = vdwg.mxu0
  %197 = vmatprep.subr.bf16.mxu0 0
  %198 = vmatpush1.bf16.msra.mxu0 %v115
  %199 = vmatprep.subr.bf16.mxu0 0
  %200 = vmatpush1.bf16.msra.mxu0 %v118
  %201 = vmatprep.subr.bf16.mxu0 0
  %202 = vmatpush1.bf16.msra.mxu0 %v121
  %203 = vmatprep.subr.bf16.mxu0 0
  %204 = vmatpush1.bf16.msra.mxu0 %v124
  %205 = vmatprep.subr.bf16.mxu0 0
  %206 = vmatpush1.bf16.msra.mxu0 0
  %207 = vmatprep.subr.bf16.mxu0 0
  %208 = vmatpush1.bf16.msra.mxu0 0
  %209 = vmatprep.subr.bf16.mxu0 0
  %210 = vmatpush1.bf16.msra.mxu0 0
  %211 = vmatprep.subr.bf16.mxu0 0
  %212 = vmatpush1.bf16.msra.mxu0 0
  %213 = vmatprep.subr.bf16.mxu0 0
  %214 = vmatpush1.bf16.msra.mxu0 0
  %215 = vmatprep.subr.bf16.mxu0 0
  %216 = vmatpush1.bf16.msra.mxu0 0
  %217 = vmatprep.subr.bf16.mxu0 0
  %218 = vmatpush1.bf16.msra.mxu0 0
  %219 = vmatprep.subr.bf16.mxu0 0
  %220 = vmatpush1.bf16.msra.mxu0 0
  %221 = vmatprep.subr.bf16.mxu0 0
  %222 = vmatpush1.bf16.msra.mxu0 0
  %223 = vmatprep.subr.bf16.mxu0 0
  %224 = vmatpush1.bf16.msra.mxu0 0
  %225 = vmatprep.subr.bf16.mxu0 0
  %226 = vmatpush1.bf16.msra.mxu0 0
  %227 = vmatprep.subr.bf16.mxu0 0
  %228 = vmatpush1.bf16.msra.mxu0 0
  %229 = vmatprep.mubr.bf16.mxu0 0
  %230 = vmatmul.mubr.bf16.gmra.mrb[0].mxu0 %v139
  %v231 = vpop.f32.mrb[0].mxu0
  %v232 = vadd.f32 0.0, %v231
  %v233 = vpop.f32.mrb[0].mxu0
  %v234 = vpop.f32.mrb[0].mxu0
  %v235 = vadd.f32 0.0, %v234
  %v236 = vpop.f32.mrb[0].mxu0
  %237 = vmatprep.mubr.bf16.mxu0 0
  %238 = vmatmul.mubr.bf16.gmra.mrb[0].mxu0 %v142
  %v239 = vpop.f32.mrb[0].mxu0
  %v240 = vadd.f32 0.0, %v239
  %v241 = vpop.f32.mrb[0].mxu0
  %v242 = vpop.f32.mrb[0].mxu0
  %v243 = vadd.f32 0.0, %v242
  %v244 = vpop.f32.mrb[0].mxu0
  %245 = vdwg.mxu0
  %v246 = vld [vmem:[%s14] sm:$0xff]
  %v247 = vld [vmem:[%s14 + $0x8] sm:$0xff]
  %v248 = vld [vmem:[%s14 + $0x10] sm:$0xff]
  %v249 = vld [vmem:[%s14 + $0x18] sm:$0xff]
  %vm250 = vcmask 785408
  %v252 = vsel %vm250, %v246, 0
  %v255 = vsel %vm250, %v247, 0
  %v258 = vsel %vm250, %v248, 0
  %v261 = vsel %vm250, %v249, 0
  %263 = vmatprep.subr.mxu0 0.0
  %264 = vmatpush1.msra.mxu0 %v179
  %265 = vmatprep.subr.mxu0 0.0
  %266 = vmatpush1.msra.mxu0 %v183
  %267 = vmatprep.subr.mxu0 0.0
  %268 = vmatpush1.msra.mxu0 %v189
  %269 = vmatprep.subr.mxu0 0.0
  %270 = vmatpush1.msra.mxu0 %v193
  %271 = vmatprep.subr.mxu0 0.0
  %272 = vmatpush1.msra.mxu0 %v181
  %273 = vmatprep.subr.mxu0 0.0
  %274 = vmatpush1.msra.mxu0 %v185
  %275 = vmatprep.subr.mxu0 0.0
  %276 = vmatpush1.msra.mxu0 %v191
  %277 = vmatprep.subr.mxu0 0.0
  %278 = vmatpush1.msra.mxu0 %v195
  %279 = vmatprep.subr.mxu0 0.0
  %280 = vmatpush1.msra.mxu0 %v232
  %281 = vmatprep.subr.mxu0 0.0
  %282 = vmatpush1.msra.mxu0 %v235
  %283 = vmatprep.subr.mxu0 0.0
  %284 = vmatpush1.msra.mxu0 %v240
  %285 = vmatprep.subr.mxu0 0.0
  %286 = vmatpush1.msra.mxu0 %v243
  %287 = vmatprep.subr.mxu0 0.0
  %288 = vmatpush1.msra.mxu0 0.0
  %289 = vmatprep.subr.mxu0 0.0
  %290 = vmatpush1.msra.mxu0 0.0
  %291 = vmatprep.subr.mxu0 0.0
  %292 = vmatpush1.msra.mxu0 0.0
  %293 = vmatprep.subr.mxu0 0.0
  %294 = vmatpush1.msra.mxu0 0.0
  %295 = vmatprep.subr.mxu0 0.0
  %296 = vmatpush1.msra.mxu0 0.0
  %297 = vmatprep.subr.mxu0 0.0
  %298 = vmatpush1.msra.mxu0 0.0
  %299 = vmatprep.subr.mxu0 0.0
  %300 = vmatpush1.msra.mxu0 0.0
  %301 = vmatprep.subr.mxu0 0.0
  %302 = vmatpush1.msra.mxu0 0.0
  %303 = vmatprep.subr.mxu0 0.0
  %304 = vmatpush1.msra.mxu0 0.0
  %305 = vmatprep.subr.mxu0 0.0
  %306 = vmatpush1.msra.mxu0 0.0
  %307 = vmatprep.subr.mxu0 0.0
  %308 = vmatpush1.msra.mxu0 0.0
  %309 = vmatprep.subr.mxu0 0.0
  %310 = vmatpush1.msra.mxu0 0.0
  %311 = vmatprep.subr.mxu0 0.0
  %312 = vmatpush1.msra.mxu0 0.0
  %313 = vmatprep.subr.mxu0 0.0
  %314 = vmatpush1.msra.mxu0 0.0
  %315 = vmatprep.subr.mxu0 0.0
  %316 = vmatpush1.msra.mxu0 0.0
  %317 = vmatprep.subr.mxu0 0.0
  %318 = vmatpush1.msra.mxu0 0.0
  %319 = vmatprep.subr.mxu0 0.0
  %320 = vmatpush1.msra.mxu0 0.0
  %321 = vmatprep.subr.mxu0 0.0
  %322 = vmatpush1.msra.mxu0 0.0
  %323 = vmatprep.subr.mxu0 0.0
  %324 = vmatpush1.msra.mxu0 0.0
  %325 = vmatprep.subr.mxu0 0.0
  %326 = vmatpush1.msra.mxu0 0.0
  %327 = vmatprep.mubr.f32.mxu0 0.0
  %328 = vmatmul.mubr.f32.gmra.mrb[0].mxu0 %v252
  %v329 = vpop.f32.mrb[0].mxu0
  %v330 = vadd.f32 0.0, %v329
  %v331 = vpop.f32.mrb[0].mxu0
  %332 = vmatprep.mubr.f32.mxu0 0.0
  %333 = vmatmul.mubr.f32.gmra.mrb[0].mxu0 %v255
  %v334 = vpop.f32.mrb[0].mxu0
  %v335 = vadd.f32 0.0, %v334
  %v336 = vpop.f32.mrb[0].mxu0
  %337 = vmatprep.mubr.f32.mxu0 0.0
  %338 = vmatmul.mubr.f32.gmra.mrb[0].mxu0 %v258
  %v339 = vpop.f32.mrb[0].mxu0
  %v340 = vadd.f32 0.0, %v339
  %v341 = vpop.f32.mrb[0].mxu0
  %342 = vmatprep.mubr.f32.mxu0 0.0
  %343 = vmatmul.mubr.f32.gmra.mrb[0].mxu0 %v261
  %v344 = vpop.f32.mrb[0].mxu0
  %v345 = vadd.f32 0.0, %v344
  %v346 = vpop.f32.mrb[0].mxu0
  %347 = vdwg.mxu0
  %v348 = vld [vmem:[%s2] sm:$0x1]
  %v349 = vld [vmem:[%s3] sm:$0x1]
  %v350 = vld [vmem:[%s10] sm:$0xff]
  %v351 = vld [vmem:[%s10 + $0x8] sm:$0xff]
  %v352 = vld [vmem:[%s10 + $0x10] sm:$0xff]
  %v353 = vld [vmem:[%s10 + $0x18] sm:$0xff]
  %v354 = vld [vmem:[%s10 + $0x20] sm:$0xff]
  %v355 = vld [vmem:[%s10 + $0x28] sm:$0xff]
  %v356 = vld [vmem:[%s10 + $0x30] sm:$0xff]
  %v357 = vld [vmem:[%s10 + $0x38] sm:$0xff]
  %v358 = vld [vmem:[%s10 + $0x40] sm:$0xff]
  %v359 = vld [vmem:[%s10 + $0x48] sm:$0xff]
  %v360 = vld [vmem:[%s10 + $0x50] sm:$0xff]
  %v361 = vld [vmem:[%s10 + $0x58] sm:$0xff]
  %v362 = vld [vmem:[%s10 + $0x60] sm:$0xff]
  %v363 = vld [vmem:[%s10 + $0x68] sm:$0xff]
  %v364 = vld [vmem:[%s10 + $0x70] sm:$0xff]
  %v365 = vld [vmem:[%s10 + $0x78] sm:$0xff]
  %v366 = vld [vmem:[%s11] sm:$0xff]
  %v367 = vlaneseq
  %v368 = vshrl.u32 %v367, 7
  %vm369 = vcmp.eq.s32.totalorder %v368, 1
  %v370 = vadd.f32 %v330, %v335
  %v371 = vadd.f32 %v370, %v340
  %v372 = vadd.f32 %v371, %v345
  %v373 = vrot.slane %v372, 4
  %v374 = vadd.f32 %v372, %v373
  %v375 = vrot.slane %v374, 2
  %v376 = vadd.f32 %v374, %v375
  %v377 = vrot.slane %v376, 1
  %v378 = vadd.f32 %v376, %v377
  %v379 = vmul.f32 %v330, %v330
  %v380 = vmul.f32 %v335, %v335
  %v381 = vmul.f32 %v340, %v340
  %v382 = vmul.f32 %v345, %v345
  %v383 = vadd.f32 %v379, %v380
  %v384 = vadd.f32 %v383, %v381
  %v385 = vadd.f32 %v384, %v382
  %v386 = vrot.slane %v385, 4
  %v387 = vadd.f32 %v385, %v386
  %v388 = vrot.slane %v387, 2
  %v389 = vadd.f32 %v387, %v388
  %v390 = vrot.slane %v389, 1
  %v391 = vadd.f32 %v389, %v390
  %v392 = vsel %vm369, %v391, %v378
  %393 = vmatprep.subr.mxu0 0.0
  %394 = vmatpush1.msra.mxu0 %v350
  %395 = vmatprep.subr.mxu0 0.0
  %396 = vmatpush1.msra.mxu0 %v351
  %397 = vmatprep.subr.mxu0 0.0
  %398 = vmatpush1.msra.mxu0 %v352
  %399 = vmatprep.subr.mxu0 0.0
  %400 = vmatpush1.msra.mxu0 %v353
  %401 = vmatprep.subr.mxu0 0.0
  %402 = vmatpush1.msra.mxu0 %v354
  %403 = vmatprep.subr.mxu0 0.0
  %404 = vmatpush1.msra.mxu0 %v355
  %405 = vmatprep.subr.mxu0 0.0
  %406 = vmatpush1.msra.mxu0 %v356
  %407 = vmatprep.subr.mxu0 0.0
  %408 = vmatpush1.msra.mxu0 %v357
  %409 = vmatprep.subr.mxu0 0.0
  %410 = vmatpush1.msra.mxu0 %v358
  %411 = vmatprep.subr.mxu0 0.0
  %412 = vmatpush1.msra.mxu0 %v359
  %413 = vmatprep.subr.mxu0 0.0
  %414 = vmatpush1.msra.mxu0 %v360
  %415 = vmatprep.subr.mxu0 0.0
  %416 = vmatpush1.msra.mxu0 %v361
  %417 = vmatprep.subr.mxu0 0.0
  %418 = vmatpush1.msra.mxu0 %v362
  %419 = vmatprep.subr.mxu0 0.0
  %420 = vmatpush1.msra.mxu0 %v363
  %421 = vmatprep.subr.mxu0 0.0
  %422 = vmatpush1.msra.mxu0 %v364
  %423 = vmatprep.subr.mxu0 0.0
  %424 = vmatpush1.msra.mxu0 %v365
  %425 = vmatprep.subr.mxu0 0.0
  %426 = vmatpush1.msra.mxu0 0.0
  %427 = vmatprep.subr.mxu0 0.0
  %428 = vmatpush1.msra.mxu0 0.0
  %429 = vmatprep.subr.mxu0 0.0
  %430 = vmatpush1.msra.mxu0 0.0
  %431 = vmatprep.subr.mxu0 0.0
  %432 = vmatpush1.msra.mxu0 0.0
  %433 = vmatprep.subr.mxu0 0.0
  %434 = vmatpush1.msra.mxu0 0.0
  %435 = vmatprep.subr.mxu0 0.0
  %436 = vmatpush1.msra.mxu0 0.0
  %437 = vmatprep.subr.mxu0 0.0
  %438 = vmatpush1.msra.mxu0 0.0
  %439 = vmatprep.subr.mxu0 0.0
  %440 = vmatpush1.msra.mxu0 0.0
  %441 = vmatprep.subr.mxu0 0.0
  %442 = vmatpush1.msra.mxu0 0.0
  %443 = vmatprep.subr.mxu0 0.0
  %444 = vmatpush1.msra.mxu0 0.0
  %445 = vmatprep.subr.mxu0 0.0
  %446 = vmatpush1.msra.mxu0 0.0
  %447 = vmatprep.subr.mxu0 0.0
  %448 = vmatpush1.msra.mxu0 0.0
  %449 = vmatprep.subr.mxu0 0.0
  %450 = vmatpush1.msra.mxu0 0.0
  %451 = vmatprep.subr.mxu0 0.0
  %452 = vmatpush1.msra.mxu0 0.0
  %453 = vmatprep.subr.mxu0 0.0
  %454 = vmatpush1.msra.mxu0 0.0
  %455 = vmatprep.subr.mxu0 0.0
  %456 = vmatpush1.msra.mxu0 0.0
  %457 = vmatprep.mubr.f32.mxu0 0.0
  %458 = vmatmul.mubr.f32.gmra.mrb[0].mxu0 %v392
  %v459 = vpop.f32.mrb[0].mxu0
  %v460 = vadd.f32 0.0, %v459
  %v461 = vpop.f32.mrb[0].mxu0
  %462 = vdwg.mxu0
  %v463 = vmul.f32 %v460, 0.001953125
  %v464 = vsel %vm369, 0.0, %v463
  %vm465 = vcmask 58368
  %v466 = vsel %vm465, %v464, 0.0
  %v467 = vrot.slane %v466, 4
  %v468 = vadd.f32 %v466, %v467
  %v469 = vrot.slane %v468, 2
  %v470 = vadd.f32 %v468, %v469
  %v471 = vrot.slane %v470, 1
  %v472 = vadd.f32 %v470, %v471
  %v473 = vsel %vm369, %v463, 0.0
  %v474 = vsel %vm465, %v473, 0.0
  %v475 = vrot.slane %v474, 4
  %v476 = vadd.f32 %v474, %v475
  %v477 = vrot.slane %v476, 2
  %v478 = vadd.f32 %v476, %v477
  %v479 = vrot.slane %v478, 1
  %v480 = vadd.f32 %v478, %v479
  %v481 = vmul.f32 %v472, %v472
  %v482 = vsub.f32 %v480, %v481
  %v483 = vmax.f32 %v482, 0.0
  %v484 = vadd.f32 %v483, 1e-05
  %v485 = vrsqrt.pop %v484
  %v486 = vmul.f32 %v348, %v485
  %v487 = vmul.f32 %v472, %v486
  %v488 = vsub.f32 %v349, %v487
  %v490 = vlaneseq
  %v491 = vshrl.u32 %v490, 7
  %v492 = vsub.s32 0, %v491
  %v493 = vrot.slane %v488, %v492
  %v496 = vlaneseq
  %v497 = vshrl.u32 %v496, 7
  %v498 = vsub.s32 0, %v497
  %v499 = vrot.slane %v486, %v498
  %v501 = vsel %vm369, %v493, %v499
  %vm502 = vcmask 64512
  %v504 = vsel %vm502, %v501, 0
  %506 = vmatprep.subr.mxu0 0.0
  %507 = vmatpush1.msra.mxu0 %v366
  %508 = vmatprep.subr.mxu0 0.0
  %509 = vmatpush1.msra.mxu0 0.0
  %510 = vmatprep.subr.mxu0 0.0
  %511 = vmatpush1.msra.mxu0 0.0
  %512 = vmatprep.subr.mxu0 0.0
  %513 = vmatpush1.msra.mxu0 0.0
  %514 = vmatprep.subr.mxu0 0.0
  %515 = vmatpush1.msra.mxu0 0.0
  %516 = vmatprep.subr.mxu0 0.0
  %517 = vmatpush1.msra.mxu0 0.0
  %518 = vmatprep.subr.mxu0 0.0
  %519 = vmatpush1.msra.mxu0 0.0
  %520 = vmatprep.subr.mxu0 0.0
  %521 = vmatpush1.msra.mxu0 0.0
  %522 = vmatprep.subr.mxu0 0.0
  %523 = vmatpush1.msra.mxu0 0.0
  %524 = vmatprep.subr.mxu0 0.0
  %525 = vmatpush1.msra.mxu0 0.0
  %526 = vmatprep.subr.mxu0 0.0
  %527 = vmatpush1.msra.mxu0 0.0
  %528 = vmatprep.subr.mxu0 0.0
  %529 = vmatpush1.msra.mxu0 0.0
  %530 = vmatprep.subr.mxu0 0.0
  %531 = vmatpush1.msra.mxu0 0.0
  %532 = vmatprep.subr.mxu0 0.0
  %533 = vmatpush1.msra.mxu0 0.0
  %534 = vmatprep.subr.mxu0 0.0
  %535 = vmatpush1.msra.mxu0 0.0
  %536 = vmatprep.subr.mxu0 0.0
  %537 = vmatpush1.msra.mxu0 0.0
  %538 = vmatprep.subr.mxu0 0.0
  %539 = vmatpush1.msra.mxu0 0.0
  %540 = vmatprep.subr.mxu0 0.0
  %541 = vmatpush1.msra.mxu0 0.0
  %542 = vmatprep.subr.mxu0 0.0
  %543 = vmatpush1.msra.mxu0 0.0
  %544 = vmatprep.subr.mxu0 0.0
  %545 = vmatpush1.msra.mxu0 0.0
  %546 = vmatprep.subr.mxu0 0.0
  %547 = vmatpush1.msra.mxu0 0.0
  %548 = vmatprep.subr.mxu0 0.0
  %549 = vmatpush1.msra.mxu0 0.0
  %550 = vmatprep.subr.mxu0 0.0
  %551 = vmatpush1.msra.mxu0 0.0
  %552 = vmatprep.subr.mxu0 0.0
  %553 = vmatpush1.msra.mxu0 0.0
  %554 = vmatprep.subr.mxu0 0.0
  %555 = vmatpush1.msra.mxu0 0.0
  %556 = vmatprep.subr.mxu0 0.0
  %557 = vmatpush1.msra.mxu0 0.0
  %558 = vmatprep.subr.mxu0 0.0
  %559 = vmatpush1.msra.mxu0 0.0
  %560 = vmatprep.subr.mxu0 0.0
  %561 = vmatpush1.msra.mxu0 0.0
  %562 = vmatprep.subr.mxu0 0.0
  %563 = vmatpush1.msra.mxu0 0.0
  %564 = vmatprep.subr.mxu0 0.0
  %565 = vmatpush1.msra.mxu0 0.0
  %566 = vmatprep.subr.mxu0 0.0
  %567 = vmatpush1.msra.mxu0 0.0
  %568 = vmatprep.subr.mxu0 0.0
  %569 = vmatpush1.msra.mxu0 0.0
  %570 = vmatprep.mubr.f32.mxu0 0.0
  %571 = vmatmul.mubr.f32.gmra.mrb[0].mxu0 %v504
  %v572 = vpop.f32.mrb[0].mxu0
  %v573 = vadd.f32 0.0, %v572
  %v574 = vpop.f32.mrb[0].mxu0
  %575 = vdwg.mxu0
  %v576 = vsel %vm369, 0.0, %v573
  %vm577 = vcmask 1041408
  %v578 = vsel %vm577, %v576, 0.0
  %v579 = vrot.slane %v578, 4
  %v580 = vadd.f32 %v578, %v579
  %v581 = vrot.slane %v580, 2
  %v582 = vadd.f32 %v580, %v581
  %v583 = vrot.slane %v582, 1
  %v584 = vadd.f32 %v582, %v583
  %v585 = vsel %vm369, %v573, 0.0
  %v586 = vsel %vm577, %v585, 0.0
  %v587 = vrot.slane %v586, 4
  %v588 = vadd.f32 %v586, %v587
  %v589 = vrot.slane %v588, 2
  %v590 = vadd.f32 %v588, %v589
  %v591 = vrot.slane %v590, 1
  %v592 = vadd.f32 %v590, %v591
  %v593 = vmul.f32 %v330, %v584
  %v594 = vmul.f32 %v335, %v584
  %v595 = vmul.f32 %v340, %v584
  %v596 = vmul.f32 %v345, %v584
  %v597 = vadd.f32 %v593, %v592
  %v598 = vadd.f32 %v594, %v592
  %v599 = vadd.f32 %v595, %v592
  %v600 = vadd.f32 %v596, %v592
  %v601 = vmax.f32 %v597, 0.0
  %v602 = vmax.f32 %v598, 0.0
  %v603 = vmax.f32 %v599, 0.0
  %v604 = vmax.f32 %v600, 0.0
  %v605 = vpack.c.bf16 %v602, %v601
  %v606 = vpack.c.bf16 %v604, %v603
  %v607 = vld [vmem:[%s4] sm:$0xff]
  %v608 = vld [vmem:[%s4 + $0x8] sm:$0xf]
  %v609 = vld [vmem:[%s4 + $0xc] sm:$0xff]
  %v610 = vld [vmem:[%s4 + $0x14] sm:$0xf]
  %v611 = vld [vmem:[%s4 + $0x18] sm:$0xff]
  %v612 = vld [vmem:[%s4 + $0x20] sm:$0xf]
  %v613 = vld [vmem:[%s4 + $0x24] sm:$0xff]
  %v614 = vld [vmem:[%s4 + $0x2c] sm:$0xf]
  %v615 = vld [vmem:[%s4 + $0x30] sm:$0xff]
  %v616 = vld [vmem:[%s4 + $0x38] sm:$0xf]
  %v617 = vld [vmem:[%s4 + $0x3c] sm:$0xff]
  %v618 = vld [vmem:[%s4 + $0x44] sm:$0xf]
  %v619 = vld [vmem:[%s4 + $0x48] sm:$0xff]
  %v620 = vld [vmem:[%s4 + $0x50] sm:$0xf]
  %v621 = vld [vmem:[%s4 + $0x54] sm:$0xff]
  %v622 = vld [vmem:[%s4 + $0x5c] sm:$0xf]
  %v623 = vld [vmem:[%s4 + $0x60] sm:$0xff]
  %v624 = vld [vmem:[%s4 + $0x68] sm:$0xf]
  %v625 = vld [vmem:[%s4 + $0x6c] sm:$0xff]
  %v626 = vld [vmem:[%s4 + $0x74] sm:$0xf]
  %v627 = vld [vmem:[%s4 + $0x78] sm:$0xff]
  %v628 = vld [vmem:[%s4 + $0x80] sm:$0xf]
  %v629 = vld [vmem:[%s4 + $0x84] sm:$0xff]
  %v630 = vld [vmem:[%s4 + $0x8c] sm:$0xf]
  %v631 = vld [vmem:[%s4 + $0x90] sm:$0xff]
  %v632 = vld [vmem:[%s4 + $0x98] sm:$0xf]
  %v633 = vld [vmem:[%s4 + $0x9c] sm:$0xff]
  %v634 = vld [vmem:[%s4 + $0xa4] sm:$0xf]
  %v635 = vld [vmem:[%s4 + $0xa8] sm:$0xff]
  %v636 = vld [vmem:[%s4 + $0xb0] sm:$0xf]
  %v637 = vld [vmem:[%s4 + $0xb4] sm:$0xff]
  %v638 = vld [vmem:[%s4 + $0xbc] sm:$0xf]
  %v671 = vunpack.c.l.b16 %v607
  %v672 = vunpack.c.h.b16 %v607
  %v673 = vunpack.c.l.b16 %v608
  %v674 = vunpack.c.l.b16 %v609
  %v675 = vunpack.c.h.b16 %v609
  %v676 = vunpack.c.l.b16 %v610
  %v677 = vunpack.c.l.b16 %v611
  %v678 = vunpack.c.h.b16 %v611
  %v679 = vunpack.c.l.b16 %v612
  %v680 = vunpack.c.l.b16 %v613
  %v681 = vunpack.c.h.b16 %v613
  %v682 = vunpack.c.l.b16 %v614
  %v683 = vunpack.c.l.b16 %v615
  %v684 = vunpack.c.h.b16 %v615
  %v685 = vunpack.c.l.b16 %v616
  %v686 = vunpack.c.l.b16 %v617
  %v687 = vunpack.c.h.b16 %v617
  %v688 = vunpack.c.l.b16 %v618
  %v689 = vunpack.c.l.b16 %v619
  %v690 = vunpack.c.h.b16 %v619
  %v691 = vunpack.c.l.b16 %v620
  %v692 = vunpack.c.l.b16 %v621
  %v693 = vunpack.c.h.b16 %v621
  %v694 = vunpack.c.l.b16 %v622
  %v695 = vunpack.c.l.b16 %v623
  %v696 = vunpack.c.h.b16 %v623
  %v697 = vunpack.c.l.b16 %v624
  %v698 = vunpack.c.l.b16 %v625
  %v699 = vunpack.c.h.b16 %v625
  %v700 = vunpack.c.l.b16 %v626
  %v701 = vunpack.c.l.b16 %v627
  %v702 = vunpack.c.h.b16 %v627
  %v703 = vunpack.c.l.b16 %v628
  %v704 = vunpack.c.l.b16 %v629
  %v705 = vunpack.c.h.b16 %v629
  %v706 = vunpack.c.l.b16 %v630
  %v707 = vunpack.c.l.b16 %v631
  %v708 = vunpack.c.h.b16 %v631
  %v709 = vunpack.c.l.b16 %v632
  %v710 = vunpack.c.l.b16 %v633
  %v711 = vunpack.c.h.b16 %v633
  %v712 = vunpack.c.l.b16 %v634
  %v713 = vunpack.c.l.b16 %v635
  %v714 = vunpack.c.h.b16 %v635
  %v715 = vunpack.c.l.b16 %v636
  %v716 = vunpack.c.l.b16 %v637
  %v717 = vunpack.c.h.b16 %v637
  %v718 = vunpack.c.l.b16 %v638
  %v719 = vpack.c.b16 %v674, %v671
  %v720 = vpack.c.b16 %v675, %v672
  %v721 = vpack.c.b16 %v676, %v673
  %v722 = vpack.c.b16 %v680, %v677
  %v723 = vpack.c.b16 %v681, %v678
  %v724 = vpack.c.b16 %v682, %v679
  %v725 = vpack.c.b16 %v686, %v683
  %v726 = vpack.c.b16 %v687, %v684
  %v727 = vpack.c.b16 %v688, %v685
  %v728 = vpack.c.b16 %v692, %v689
  %v729 = vpack.c.b16 %v693, %v690
  %v730 = vpack.c.b16 %v694, %v691
  %v731 = vpack.c.b16 %v698, %v695
  %v732 = vpack.c.b16 %v699, %v696
  %v733 = vpack.c.b16 %v700, %v697
  %v734 = vpack.c.b16 %v704, %v701
  %v735 = vpack.c.b16 %v705, %v702
  %v736 = vpack.c.b16 %v706, %v703
  %v737 = vpack.c.b16 %v710, %v707
  %v738 = vpack.c.b16 %v711, %v708
  %v739 = vpack.c.b16 %v712, %v709
  %v740 = vpack.c.b16 %v716, %v713
  %v741 = vpack.c.b16 %v717, %v714
  %v742 = vpack.c.b16 %v718, %v715
  %767 = vmatprep.subr.bf16.mxu0 %v720
  %768 = vmatpush1.bf16.msra.mxu0 %v719
  %769 = vmatprep.subr.bf16.mxu0 %v723
  %770 = vmatpush1.bf16.msra.mxu0 %v722
  %771 = vmatprep.subr.bf16.mxu0 %v726
  %772 = vmatpush1.bf16.msra.mxu0 %v725
  %773 = vmatprep.subr.bf16.mxu0 %v729
  %774 = vmatpush1.bf16.msra.mxu0 %v728
  %775 = vmatprep.subr.bf16.mxu0 %v732
  %776 = vmatpush1.bf16.msra.mxu0 %v731
  %777 = vmatprep.subr.bf16.mxu0 %v735
  %778 = vmatpush1.bf16.msra.mxu0 %v734
  %779 = vmatprep.subr.bf16.mxu0 %v738
  %780 = vmatpush1.bf16.msra.mxu0 %v737
  %781 = vmatprep.subr.bf16.mxu0 %v741
  %782 = vmatpush1.bf16.msra.mxu0 %v740
  %783 = vmatprep.subr.bf16.mxu0 0
  %784 = vmatpush1.bf16.msra.mxu0 0
  %785 = vmatprep.subr.bf16.mxu0 0
  %786 = vmatpush1.bf16.msra.mxu0 0
  %787 = vmatprep.subr.bf16.mxu0 0
  %788 = vmatpush1.bf16.msra.mxu0 0
  %789 = vmatprep.subr.bf16.mxu0 0
  %790 = vmatpush1.bf16.msra.mxu0 0
  %791 = vmatprep.subr.bf16.mxu0 0
  %792 = vmatpush1.bf16.msra.mxu0 0
  %793 = vmatprep.subr.bf16.mxu0 0
  %794 = vmatpush1.bf16.msra.mxu0 0
  %795 = vmatprep.subr.bf16.mxu0 0
  %796 = vmatpush1.bf16.msra.mxu0 0
  %797 = vmatprep.subr.bf16.mxu0 0
  %798 = vmatpush1.bf16.msra.mxu0 0
  %799 = vmatprep.mubr.bf16.mxu0 0
  %800 = vmatmul.mubr.bf16.gmra.mrb[0].mxu0 %v605
  %v801 = vpop.f32.mrb[0].mxu0
  %v802 = vadd.f32 0.0, %v801
  %v803 = vpop.f32.mrb[0].mxu0
  %v804 = vadd.f32 0.0, %v803
  %v805 = vpop.f32.mrb[0].mxu0
  %v806 = vadd.f32 0.0, %v805
  %v807 = vpop.f32.mrb[0].mxu0
  %v808 = vadd.f32 0.0, %v807
  %809 = vmatprep.mubr.bf16.mxu0 0
  %810 = vmatmul.mubr.bf16.gmra.mrb[0].mxu0 %v606
  %v811 = vpop.f32.mrb[0].mxu0
  %v812 = vadd.f32 0.0, %v811
  %v813 = vpop.f32.mrb[0].mxu0
  %v814 = vadd.f32 0.0, %v813
  %v815 = vpop.f32.mrb[0].mxu0
  %v816 = vadd.f32 0.0, %v815
  %v817 = vpop.f32.mrb[0].mxu0
  %v818 = vadd.f32 0.0, %v817
  %819 = vdwg.mxu0
  %820 = vmatprep.subr.bf16.mxu0 0
  %821 = vmatpush1.bf16.msra.mxu0 %v721
  %822 = vmatprep.subr.bf16.mxu0 0
  %823 = vmatpush1.bf16.msra.mxu0 %v724
  %824 = vmatprep.subr.bf16.mxu0 0
  %825 = vmatpush1.bf16.msra.mxu0 %v727
  %826 = vmatprep.subr.bf16.mxu0 0
  %827 = vmatpush1.bf16.msra.mxu0 %v730
  %828 = vmatprep.subr.bf16.mxu0 0
  %829 = vmatpush1.bf16.msra.mxu0 %v733
  %830 = vmatprep.subr.bf16.mxu0 0
  %831 = vmatpush1.bf16.msra.mxu0 %v736
  %832 = vmatprep.subr.bf16.mxu0 0
  %833 = vmatpush1.bf16.msra.mxu0 %v739
  %834 = vmatprep.subr.bf16.mxu0 0
  %835 = vmatpush1.bf16.msra.mxu0 %v742
  %836 = vmatprep.subr.bf16.mxu0 0
  %837 = vmatpush1.bf16.msra.mxu0 0
  %838 = vmatprep.subr.bf16.mxu0 0
  %839 = vmatpush1.bf16.msra.mxu0 0
  %840 = vmatprep.subr.bf16.mxu0 0
  %841 = vmatpush1.bf16.msra.mxu0 0
  %842 = vmatprep.subr.bf16.mxu0 0
  %843 = vmatpush1.bf16.msra.mxu0 0
  %844 = vmatprep.subr.bf16.mxu0 0
  %845 = vmatpush1.bf16.msra.mxu0 0
  %846 = vmatprep.subr.bf16.mxu0 0
  %847 = vmatpush1.bf16.msra.mxu0 0
  %848 = vmatprep.subr.bf16.mxu0 0
  %849 = vmatpush1.bf16.msra.mxu0 0
  %850 = vmatprep.subr.bf16.mxu0 0
  %851 = vmatpush1.bf16.msra.mxu0 0
  %852 = vmatprep.mubr.bf16.mxu0 0
  %853 = vmatmul.mubr.bf16.gmra.mrb[0].mxu0 %v605
  %v854 = vpop.f32.mrb[0].mxu0
  %v855 = vadd.f32 0.0, %v854
  %v856 = vpop.f32.mrb[0].mxu0
  %v857 = vpop.f32.mrb[0].mxu0
  %v858 = vadd.f32 0.0, %v857
  %v859 = vpop.f32.mrb[0].mxu0
  %860 = vmatprep.mubr.bf16.mxu0 0
  %861 = vmatmul.mubr.bf16.gmra.mrb[0].mxu0 %v606
  %v862 = vpop.f32.mrb[0].mxu0
  %v863 = vadd.f32 0.0, %v862
  %v864 = vpop.f32.mrb[0].mxu0
  %v865 = vpop.f32.mrb[0].mxu0
  %v866 = vadd.f32 0.0, %v865
  %v867 = vpop.f32.mrb[0].mxu0
  %868 = vdwg.mxu0
  %869 = vmatprep.subr.mxu0 0.0
  %870 = vmatpush1.msra.mxu0 %v802
  %871 = vmatprep.subr.mxu0 0.0
  %872 = vmatpush1.msra.mxu0 %v806
  %873 = vmatprep.subr.mxu0 0.0
  %874 = vmatpush1.msra.mxu0 %v812
  %875 = vmatprep.subr.mxu0 0.0
  %876 = vmatpush1.msra.mxu0 %v816
  %877 = vmatprep.subr.mxu0 0.0
  %878 = vmatpush1.msra.mxu0 %v804
  %879 = vmatprep.subr.mxu0 0.0
  %880 = vmatpush1.msra.mxu0 %v808
  %881 = vmatprep.subr.mxu0 0.0
  %882 = vmatpush1.msra.mxu0 %v814
  %883 = vmatprep.subr.mxu0 0.0
  %884 = vmatpush1.msra.mxu0 %v818
  %885 = vmatprep.subr.mxu0 0.0
  %886 = vmatpush1.msra.mxu0 %v855
  %887 = vmatprep.subr.mxu0 0.0
  %888 = vmatpush1.msra.mxu0 %v858
  %889 = vmatprep.subr.mxu0 0.0
  %890 = vmatpush1.msra.mxu0 %v863
  %891 = vmatprep.subr.mxu0 0.0
  %892 = vmatpush1.msra.mxu0 %v866
  %893 = vmatprep.subr.mxu0 0.0
  %894 = vmatpush1.msra.mxu0 0.0
  %895 = vmatprep.subr.mxu0 0.0
  %896 = vmatpush1.msra.mxu0 0.0
  %897 = vmatprep.subr.mxu0 0.0
  %898 = vmatpush1.msra.mxu0 0.0
  %899 = vmatprep.subr.mxu0 0.0
  %900 = vmatpush1.msra.mxu0 0.0
  %901 = vmatprep.subr.mxu0 0.0
  %902 = vmatpush1.msra.mxu0 0.0
  %903 = vmatprep.subr.mxu0 0.0
  %904 = vmatpush1.msra.mxu0 0.0
  %905 = vmatprep.subr.mxu0 0.0
  %906 = vmatpush1.msra.mxu0 0.0
  %907 = vmatprep.subr.mxu0 0.0
  %908 = vmatpush1.msra.mxu0 0.0
  %909 = vmatprep.subr.mxu0 0.0
  %910 = vmatpush1.msra.mxu0 0.0
  %911 = vmatprep.subr.mxu0 0.0
  %912 = vmatpush1.msra.mxu0 0.0
  %913 = vmatprep.subr.mxu0 0.0
  %914 = vmatpush1.msra.mxu0 0.0
  %915 = vmatprep.subr.mxu0 0.0
  %916 = vmatpush1.msra.mxu0 0.0
  %917 = vmatprep.subr.mxu0 0.0
  %918 = vmatpush1.msra.mxu0 0.0
  %919 = vmatprep.subr.mxu0 0.0
  %920 = vmatpush1.msra.mxu0 0.0
  %921 = vmatprep.subr.mxu0 0.0
  %922 = vmatpush1.msra.mxu0 0.0
  %923 = vmatprep.subr.mxu0 0.0
  %924 = vmatpush1.msra.mxu0 0.0
  %925 = vmatprep.subr.mxu0 0.0
  %926 = vmatpush1.msra.mxu0 0.0
  %927 = vmatprep.subr.mxu0 0.0
  %928 = vmatpush1.msra.mxu0 0.0
  %929 = vmatprep.subr.mxu0 0.0
  %930 = vmatpush1.msra.mxu0 0.0
  %931 = vmatprep.subr.mxu0 0.0
  %932 = vmatpush1.msra.mxu0 0.0
  %933 = vmatprep.mubr.f32.mxu0 0.0
  %934 = vmatmul.mubr.f32.gmra.mrb[0].mxu0 %v252
  %v935 = vpop.f32.mrb[0].mxu0
  %v936 = vadd.f32 0.0, %v935
  %v937 = vpop.f32.mrb[0].mxu0
  %938 = vmatprep.mubr.f32.mxu0 0.0
  %939 = vmatmul.mubr.f32.gmra.mrb[0].mxu0 %v255
  %v940 = vpop.f32.mrb[0].mxu0
  %v941 = vadd.f32 0.0, %v940
  %v942 = vpop.f32.mrb[0].mxu0
  %943 = vmatprep.mubr.f32.mxu0 0.0
  %944 = vmatmul.mubr.f32.gmra.mrb[0].mxu0 %v258
  %v945 = vpop.f32.mrb[0].mxu0
  %v946 = vadd.f32 0.0, %v945
  %v947 = vpop.f32.mrb[0].mxu0
  %948 = vmatprep.mubr.f32.mxu0 0.0
  %949 = vmatmul.mubr.f32.gmra.mrb[0].mxu0 %v261
  %v950 = vpop.f32.mrb[0].mxu0
  %v951 = vadd.f32 0.0, %v950
  %v952 = vpop.f32.mrb[0].mxu0
  %953 = vdwg.mxu0
  %v954 = vld [vmem:[%s5] sm:$0x1]
  %v955 = vld [vmem:[%s6] sm:$0x1]
  %v956 = vadd.f32 %v936, %v941
  %v957 = vadd.f32 %v956, %v946
  %v958 = vadd.f32 %v957, %v951
  %v959 = vrot.slane %v958, 4
  %v960 = vadd.f32 %v958, %v959
  %v961 = vrot.slane %v960, 2
  %v962 = vadd.f32 %v960, %v961
  %v963 = vrot.slane %v962, 1
  %v964 = vadd.f32 %v962, %v963
  %v965 = vmul.f32 %v936, %v936
  %v966 = vmul.f32 %v941, %v941
  %v967 = vmul.f32 %v946, %v946
  %v968 = vmul.f32 %v951, %v951
  %v969 = vadd.f32 %v965, %v966
  %v970 = vadd.f32 %v969, %v967
  %v971 = vadd.f32 %v970, %v968
  %v972 = vrot.slane %v971, 4
  %v973 = vadd.f32 %v971, %v972
  %v974 = vrot.slane %v973, 2
  %v975 = vadd.f32 %v973, %v974
  %v976 = vrot.slane %v975, 1
  %v977 = vadd.f32 %v975, %v976
  %v978 = vsel %vm369, %v977, %v964
  %979 = vmatprep.subr.mxu0 0.0
  %980 = vmatpush1.msra.mxu0 %v350
  %981 = vmatprep.subr.mxu0 0.0
  %982 = vmatpush1.msra.mxu0 %v351
  %983 = vmatprep.subr.mxu0 0.0
  %984 = vmatpush1.msra.mxu0 %v352
  %985 = vmatprep.subr.mxu0 0.0
  %986 = vmatpush1.msra.mxu0 %v353
  %987 = vmatprep.subr.mxu0 0.0
  %988 = vmatpush1.msra.mxu0 %v354
  %989 = vmatprep.subr.mxu0 0.0
  %990 = vmatpush1.msra.mxu0 %v355
  %991 = vmatprep.subr.mxu0 0.0
  %992 = vmatpush1.msra.mxu0 %v356
  %993 = vmatprep.subr.mxu0 0.0
  %994 = vmatpush1.msra.mxu0 %v357
  %995 = vmatprep.subr.mxu0 0.0
  %996 = vmatpush1.msra.mxu0 %v358
  %997 = vmatprep.subr.mxu0 0.0
  %998 = vmatpush1.msra.mxu0 %v359
  %999 = vmatprep.subr.mxu0 0.0
  %1000 = vmatpush1.msra.mxu0 %v360
  %1001 = vmatprep.subr.mxu0 0.0
  %1002 = vmatpush1.msra.mxu0 %v361
  %1003 = vmatprep.subr.mxu0 0.0
  %1004 = vmatpush1.msra.mxu0 %v362
  %1005 = vmatprep.subr.mxu0 0.0
  %1006 = vmatpush1.msra.mxu0 %v363
  %1007 = vmatprep.subr.mxu0 0.0
  %1008 = vmatpush1.msra.mxu0 %v364
  %1009 = vmatprep.subr.mxu0 0.0
  %1010 = vmatpush1.msra.mxu0 %v365
  %1011 = vmatprep.subr.mxu0 0.0
  %1012 = vmatpush1.msra.mxu0 0.0
  %1013 = vmatprep.subr.mxu0 0.0
  %1014 = vmatpush1.msra.mxu0 0.0
  %1015 = vmatprep.subr.mxu0 0.0
  %1016 = vmatpush1.msra.mxu0 0.0
  %1017 = vmatprep.subr.mxu0 0.0
  %1018 = vmatpush1.msra.mxu0 0.0
  %1019 = vmatprep.subr.mxu0 0.0
  %1020 = vmatpush1.msra.mxu0 0.0
  %1021 = vmatprep.subr.mxu0 0.0
  %1022 = vmatpush1.msra.mxu0 0.0
  %1023 = vmatprep.subr.mxu0 0.0
  %1024 = vmatpush1.msra.mxu0 0.0
  %1025 = vmatprep.subr.mxu0 0.0
  %1026 = vmatpush1.msra.mxu0 0.0
  %1027 = vmatprep.subr.mxu0 0.0
  %1028 = vmatpush1.msra.mxu0 0.0
  %1029 = vmatprep.subr.mxu0 0.0
  %1030 = vmatpush1.msra.mxu0 0.0
  %1031 = vmatprep.subr.mxu0 0.0
  %1032 = vmatpush1.msra.mxu0 0.0
  %1033 = vmatprep.subr.mxu0 0.0
  %1034 = vmatpush1.msra.mxu0 0.0
  %1035 = vmatprep.subr.mxu0 0.0
  %1036 = vmatpush1.msra.mxu0 0.0
  %1037 = vmatprep.subr.mxu0 0.0
  %1038 = vmatpush1.msra.mxu0 0.0
  %1039 = vmatprep.subr.mxu0 0.0
  %1040 = vmatpush1.msra.mxu0 0.0
  %1041 = vmatprep.subr.mxu0 0.0
  %1042 = vmatpush1.msra.mxu0 0.0
  %1043 = vmatprep.mubr.f32.mxu0 0.0
  %1044 = vmatmul.mubr.f32.gmra.mrb[0].mxu0 %v978
  %v1045 = vpop.f32.mrb[0].mxu0
  %v1046 = vadd.f32 0.0, %v1045
  %v1047 = vpop.f32.mrb[0].mxu0
  %1048 = vdwg.mxu0
  %v1049 = vmul.f32 %v1046, 0.001953125
  %v1050 = vsel %vm369, 0.0, %v1049
  %v1051 = vsel %vm465, %v1050, 0.0
  %v1052 = vrot.slane %v1051, 4
  %v1053 = vadd.f32 %v1051, %v1052
  %v1054 = vrot.slane %v1053, 2
  %v1055 = vadd.f32 %v1053, %v1054
  %v1056 = vrot.slane %v1055, 1
  %v1057 = vadd.f32 %v1055, %v1056
  %v1058 = vsel %vm369, %v1049, 0.0
  %v1059 = vsel %vm465, %v1058, 0.0
  %v1060 = vrot.slane %v1059, 4
  %v1061 = vadd.f32 %v1059, %v1060
  %v1062 = vrot.slane %v1061, 2
  %v1063 = vadd.f32 %v1061, %v1062
  %v1064 = vrot.slane %v1063, 1
  %v1065 = vadd.f32 %v1063, %v1064
  %v1066 = vmul.f32 %v1057, %v1057
  %v1067 = vsub.f32 %v1065, %v1066
  %v1068 = vmax.f32 %v1067, 0.0
  %v1069 = vadd.f32 %v1068, 1e-05
  %v1070 = vrsqrt.pop %v1069
  %v1071 = vmul.f32 %v954, %v1070
  %v1072 = vmul.f32 %v1057, %v1071
  %v1073 = vsub.f32 %v955, %v1072
  %v1075 = vlaneseq
  %v1076 = vshrl.u32 %v1075, 7
  %v1077 = vsub.s32 0, %v1076
  %v1078 = vrot.slane %v1073, %v1077
  %v1081 = vlaneseq
  %v1082 = vshrl.u32 %v1081, 7
  %v1083 = vsub.s32 0, %v1082
  %v1084 = vrot.slane %v1071, %v1083
  %v1086 = vsel %vm369, %v1078, %v1084
  %v1088 = vsel %vm502, %v1086, 0
  %1090 = vmatprep.subr.mxu0 0.0
  %1091 = vmatpush1.msra.mxu0 %v366
  %1092 = vmatprep.subr.mxu0 0.0
  %1093 = vmatpush1.msra.mxu0 0.0
  %1094 = vmatprep.subr.mxu0 0.0
  %1095 = vmatpush1.msra.mxu0 0.0
  %1096 = vmatprep.subr.mxu0 0.0
  %1097 = vmatpush1.msra.mxu0 0.0
  %1098 = vmatprep.subr.mxu0 0.0
  %1099 = vmatpush1.msra.mxu0 0.0
  %1100 = vmatprep.subr.mxu0 0.0
  %1101 = vmatpush1.msra.mxu0 0.0
  %1102 = vmatprep.subr.mxu0 0.0
  %1103 = vmatpush1.msra.mxu0 0.0
  %1104 = vmatprep.subr.mxu0 0.0
  %1105 = vmatpush1.msra.mxu0 0.0
  %1106 = vmatprep.subr.mxu0 0.0
  %1107 = vmatpush1.msra.mxu0 0.0
  %1108 = vmatprep.subr.mxu0 0.0
  %1109 = vmatpush1.msra.mxu0 0.0
  %1110 = vmatprep.subr.mxu0 0.0
  %1111 = vmatpush1.msra.mxu0 0.0
  %1112 = vmatprep.subr.mxu0 0.0
  %1113 = vmatpush1.msra.mxu0 0.0
  %1114 = vmatprep.subr.mxu0 0.0
  %1115 = vmatpush1.msra.mxu0 0.0
  %1116 = vmatprep.subr.mxu0 0.0
  %1117 = vmatpush1.msra.mxu0 0.0
  %1118 = vmatprep.subr.mxu0 0.0
  %1119 = vmatpush1.msra.mxu0 0.0
  %1120 = vmatprep.subr.mxu0 0.0
  %1121 = vmatpush1.msra.mxu0 0.0
  %1122 = vmatprep.subr.mxu0 0.0
  %1123 = vmatpush1.msra.mxu0 0.0
  %1124 = vmatprep.subr.mxu0 0.0
  %1125 = vmatpush1.msra.mxu0 0.0
  %1126 = vmatprep.subr.mxu0 0.0
  %1127 = vmatpush1.msra.mxu0 0.0
  %1128 = vmatprep.subr.mxu0 0.0
  %1129 = vmatpush1.msra.mxu0 0.0
  %1130 = vmatprep.subr.mxu0 0.0
  %1131 = vmatpush1.msra.mxu0 0.0
  %1132 = vmatprep.subr.mxu0 0.0
  %1133 = vmatpush1.msra.mxu0 0.0
  %1134 = vmatprep.subr.mxu0 0.0
  %1135 = vmatpush1.msra.mxu0 0.0
  %1136 = vmatprep.subr.mxu0 0.0
  %1137 = vmatpush1.msra.mxu0 0.0
  %1138 = vmatprep.subr.mxu0 0.0
  %1139 = vmatpush1.msra.mxu0 0.0
  %1140 = vmatprep.subr.mxu0 0.0
  %1141 = vmatpush1.msra.mxu0 0.0
  %1142 = vmatprep.subr.mxu0 0.0
  %1143 = vmatpush1.msra.mxu0 0.0
  %1144 = vmatprep.subr.mxu0 0.0
  %1145 = vmatpush1.msra.mxu0 0.0
  %1146 = vmatprep.subr.mxu0 0.0
  %1147 = vmatpush1.msra.mxu0 0.0
  %1148 = vmatprep.subr.mxu0 0.0
  %1149 = vmatpush1.msra.mxu0 0.0
  %1150 = vmatprep.subr.mxu0 0.0
  %1151 = vmatpush1.msra.mxu0 0.0
  %1152 = vmatprep.subr.mxu0 0.0
  %1153 = vmatpush1.msra.mxu0 0.0
  %1154 = vmatprep.mubr.f32.mxu0 0.0
  %1155 = vmatmul.mubr.f32.gmra.mrb[0].mxu0 %v1088
  %v1156 = vpop.f32.mrb[0].mxu0
  %v1157 = vadd.f32 0.0, %v1156
  %v1158 = vpop.f32.mrb[0].mxu0
  %1159 = vdwg.mxu0
  %v1160 = vsel %vm369, 0.0, %v1157
  %v1161 = vsel %vm577, %v1160, 0.0
  %v1162 = vrot.slane %v1161, 4
  %v1163 = vadd.f32 %v1161, %v1162
  %v1164 = vrot.slane %v1163, 2
  %v1165 = vadd.f32 %v1163, %v1164
  %v1166 = vrot.slane %v1165, 1
  %v1167 = vadd.f32 %v1165, %v1166
  %v1168 = vsel %vm369, %v1157, 0.0
  %v1169 = vsel %vm577, %v1168, 0.0
  %v1170 = vrot.slane %v1169, 4
  %v1171 = vadd.f32 %v1169, %v1170
  %v1172 = vrot.slane %v1171, 2
  %v1173 = vadd.f32 %v1171, %v1172
  %v1174 = vrot.slane %v1173, 1
  %v1175 = vadd.f32 %v1173, %v1174
  %v1176 = vmul.f32 %v936, %v1167
  %v1177 = vmul.f32 %v941, %v1167
  %v1178 = vmul.f32 %v946, %v1167
  %v1179 = vmul.f32 %v951, %v1167
  %v1180 = vadd.f32 %v1176, %v1175
  %v1181 = vadd.f32 %v1177, %v1175
  %v1182 = vadd.f32 %v1178, %v1175
  %v1183 = vadd.f32 %v1179, %v1175
  %v1184 = vmax.f32 %v1180, 0.0
  %v1185 = vmax.f32 %v1181, 0.0
  %v1186 = vmax.f32 %v1182, 0.0
  %v1187 = vmax.f32 %v1183, 0.0
  %v1188 = vpack.c.bf16 %v1185, %v1184
  %v1189 = vpack.c.bf16 %v1187, %v1186
  %v1190 = vld [vmem:[%s7] sm:$0xf]
  %v1191 = vld [vmem:[%s7 + $0x4] sm:$0xf]
  %v1192 = vld [vmem:[%s7 + $0x8] sm:$0xf]
  %v1193 = vld [vmem:[%s7 + $0xc] sm:$0xf]
  %v1194 = vld [vmem:[%s7 + $0x10] sm:$0xf]
  %v1195 = vld [vmem:[%s7 + $0x14] sm:$0xf]
  %v1196 = vld [vmem:[%s7 + $0x18] sm:$0xf]
  %v1197 = vld [vmem:[%s7 + $0x1c] sm:$0xf]
  %v1198 = vld [vmem:[%s7 + $0x20] sm:$0xf]
  %v1199 = vld [vmem:[%s7 + $0x24] sm:$0xf]
  %v1200 = vld [vmem:[%s7 + $0x28] sm:$0xf]
  %v1201 = vld [vmem:[%s7 + $0x2c] sm:$0xf]
  %v1202 = vld [vmem:[%s7 + $0x30] sm:$0xf]
  %v1203 = vld [vmem:[%s7 + $0x34] sm:$0xf]
  %v1204 = vld [vmem:[%s7 + $0x38] sm:$0xf]
  %v1205 = vld [vmem:[%s7 + $0x3c] sm:$0xf]
  %v1222 = vunpack.c.l.b16 %v1190
  %v1223 = vunpack.c.l.b16 %v1191
  %v1224 = vunpack.c.l.b16 %v1192
  %v1225 = vunpack.c.l.b16 %v1193
  %v1226 = vunpack.c.l.b16 %v1194
  %v1227 = vunpack.c.l.b16 %v1195
  %v1228 = vunpack.c.l.b16 %v1196
  %v1229 = vunpack.c.l.b16 %v1197
  %v1230 = vunpack.c.l.b16 %v1198
  %v1231 = vunpack.c.l.b16 %v1199
  %v1232 = vunpack.c.l.b16 %v1200
  %v1233 = vunpack.c.l.b16 %v1201
  %v1234 = vunpack.c.l.b16 %v1202
  %v1235 = vunpack.c.l.b16 %v1203
  %v1236 = vunpack.c.l.b16 %v1204
  %v1237 = vunpack.c.l.b16 %v1205
  %v1238 = vpack.c.b16 %v1223, %v1222
  %v1239 = vpack.c.b16 %v1225, %v1224
  %v1240 = vpack.c.b16 %v1227, %v1226
  %v1241 = vpack.c.b16 %v1229, %v1228
  %v1242 = vpack.c.b16 %v1231, %v1230
  %v1243 = vpack.c.b16 %v1233, %v1232
  %v1244 = vpack.c.b16 %v1235, %v1234
  %v1245 = vpack.c.b16 %v1237, %v1236
  %1254 = vmatprep.subr.bf16.mxu0 0
  %1255 = vmatpush1.bf16.msra.mxu0 %v1238
  %1256 = vmatprep.subr.bf16.mxu0 0
  %1257 = vmatpush1.bf16.msra.mxu0 %v1239
  %1258 = vmatprep.subr.bf16.mxu0 0
  %1259 = vmatpush1.bf16.msra.mxu0 %v1240
  %1260 = vmatprep.subr.bf16.mxu0 0
  %1261 = vmatpush1.bf16.msra.mxu0 %v1241
  %1262 = vmatprep.subr.bf16.mxu0 0
  %1263 = vmatpush1.bf16.msra.mxu0 %v1242
  %1264 = vmatprep.subr.bf16.mxu0 0
  %1265 = vmatpush1.bf16.msra.mxu0 %v1243
  %1266 = vmatprep.subr.bf16.mxu0 0
  %1267 = vmatpush1.bf16.msra.mxu0 %v1244
  %1268 = vmatprep.subr.bf16.mxu0 0
  %1269 = vmatpush1.bf16.msra.mxu0 %v1245
  %1270 = vmatprep.subr.bf16.mxu0 0
  %1271 = vmatpush1.bf16.msra.mxu0 0
  %1272 = vmatprep.subr.bf16.mxu0 0
  %1273 = vmatpush1.bf16.msra.mxu0 0
  %1274 = vmatprep.subr.bf16.mxu0 0
  %1275 = vmatpush1.bf16.msra.mxu0 0
  %1276 = vmatprep.subr.bf16.mxu0 0
  %1277 = vmatpush1.bf16.msra.mxu0 0
  %1278 = vmatprep.subr.bf16.mxu0 0
  %1279 = vmatpush1.bf16.msra.mxu0 0
  %1280 = vmatprep.subr.bf16.mxu0 0
  %1281 = vmatpush1.bf16.msra.mxu0 0
  %1282 = vmatprep.subr.bf16.mxu0 0
  %1283 = vmatpush1.bf16.msra.mxu0 0
  %1284 = vmatprep.subr.bf16.mxu0 0
  %1285 = vmatpush1.bf16.msra.mxu0 0
  %1286 = vmatprep.mubr.bf16.mxu0 0
  %1287 = vmatmul.mubr.bf16.gmra.mrb[0].mxu0 %v1188
  %v1288 = vpop.f32.mrb[0].mxu0
  %v1289 = vadd.f32 0.0, %v1288
  %v1290 = vpop.f32.mrb[0].mxu0
  %v1291 = vpop.f32.mrb[0].mxu0
  %v1292 = vadd.f32 0.0, %v1291
  %v1293 = vpop.f32.mrb[0].mxu0
  %1294 = vmatprep.mubr.bf16.mxu0 0
  %1295 = vmatmul.mubr.bf16.gmra.mrb[0].mxu0 %v1189
  %v1296 = vpop.f32.mrb[0].mxu0
  %v1297 = vadd.f32 0.0, %v1296
  %v1298 = vpop.f32.mrb[0].mxu0
  %v1299 = vpop.f32.mrb[0].mxu0
  %v1300 = vadd.f32 0.0, %v1299
  %v1301 = vpop.f32.mrb[0].mxu0
  %1302 = vdwg.mxu0
  %v1303 = vld [vmem:[%s8] sm:$0x1]
  %v1304 = vld [vmem:[%s9] sm:$0x1]
  %v1305 = vld [vmem:[%s12] sm:$0xff]
  %v1306 = vld [vmem:[%s12 + $0x8] sm:$0xff]
  %v1307 = vld [vmem:[%s12 + $0x10] sm:$0xff]
  %v1308 = vld [vmem:[%s12 + $0x18] sm:$0xff]
  %v1309 = vld [vmem:[%s12 + $0x20] sm:$0xff]
  %v1310 = vld [vmem:[%s12 + $0x28] sm:$0xff]
  %v1311 = vld [vmem:[%s12 + $0x30] sm:$0xff]
  %v1312 = vld [vmem:[%s12 + $0x38] sm:$0xff]
  %v1313 = vld [vmem:[%s13] sm:$0xf]
  %v1314 = vsel %vm137, %v1289, 0.0
  %v1315 = vsel %vm137, %v1292, 0.0
  %v1316 = vadd.f32 %v1314, %v1315
  %v1317 = vsel %vm137, %v1297, 0.0
  %v1318 = vadd.f32 %v1316, %v1317
  %v1319 = vsel %vm137, %v1300, 0.0
  %v1320 = vadd.f32 %v1318, %v1319
  %v1321 = vrot.slane %v1320, 4
  %v1322 = vadd.f32 %v1320, %v1321
  %v1323 = vrot.slane %v1322, 2
  %v1324 = vadd.f32 %v1322, %v1323
  %v1325 = vrot.slane %v1324, 1
  %v1326 = vadd.f32 %v1324, %v1325
  %v1327 = vmul.f32 %v1289, %v1289
  %v1328 = vmul.f32 %v1292, %v1292
  %v1329 = vmul.f32 %v1297, %v1297
  %v1330 = vmul.f32 %v1300, %v1300
  %v1331 = vsel %vm137, %v1327, 0.0
  %v1332 = vsel %vm137, %v1328, 0.0
  %v1333 = vadd.f32 %v1331, %v1332
  %v1334 = vsel %vm137, %v1329, 0.0
  %v1335 = vadd.f32 %v1333, %v1334
  %v1336 = vsel %vm137, %v1330, 0.0
  %v1337 = vadd.f32 %v1335, %v1336
  %v1338 = vrot.slane %v1337, 4
  %v1339 = vadd.f32 %v1337, %v1338
  %v1340 = vrot.slane %v1339, 2
  %v1341 = vadd.f32 %v1339, %v1340
  %v1342 = vrot.slane %v1341, 1
  %v1343 = vadd.f32 %v1341, %v1342
  %v1344 = vsel %vm369, %v1343, %v1326
  %v1346 = vsel %vm137, %v1344, 0
  %1348 = vmatprep.subr.mxu0 0.0
  %1349 = vmatpush1.msra.mxu0 %v1305
  %1350 = vmatprep.subr.mxu0 0.0
  %1351 = vmatpush1.msra.mxu0 %v1306
  %1352 = vmatprep.subr.mxu0 0.0
  %1353 = vmatpush1.msra.mxu0 %v1307
  %1354 = vmatprep.subr.mxu0 0.0
  %1355 = vmatpush1.msra.mxu0 %v1308
  %1356 = vmatprep.subr.mxu0 0.0
  %1357 = vmatpush1.msra.mxu0 %v1309
  %1358 = vmatprep.subr.mxu0 0.0
  %1359 = vmatpush1.msra.mxu0 %v1310
  %1360 = vmatprep.subr.mxu0 0.0
  %1361 = vmatpush1.msra.mxu0 %v1311
  %1362 = vmatprep.subr.mxu0 0.0
  %1363 = vmatpush1.msra.mxu0 %v1312
  %1364 = vmatprep.subr.mxu0 0.0
  %1365 = vmatpush1.msra.mxu0 0.0
  %1366 = vmatprep.subr.mxu0 0.0
  %1367 = vmatpush1.msra.mxu0 0.0
  %1368 = vmatprep.subr.mxu0 0.0
  %1369 = vmatpush1.msra.mxu0 0.0
  %1370 = vmatprep.subr.mxu0 0.0
  %1371 = vmatpush1.msra.mxu0 0.0
  %1372 = vmatprep.subr.mxu0 0.0
  %1373 = vmatpush1.msra.mxu0 0.0
  %1374 = vmatprep.subr.mxu0 0.0
  %1375 = vmatpush1.msra.mxu0 0.0
  %1376 = vmatprep.subr.mxu0 0.0
  %1377 = vmatpush1.msra.mxu0 0.0
  %1378 = vmatprep.subr.mxu0 0.0
  %1379 = vmatpush1.msra.mxu0 0.0
  %1380 = vmatprep.subr.mxu0 0.0
  %1381 = vmatpush1.msra.mxu0 0.0
  %1382 = vmatprep.subr.mxu0 0.0
  %1383 = vmatpush1.msra.mxu0 0.0
  %1384 = vmatprep.subr.mxu0 0.0
  %1385 = vmatpush1.msra.mxu0 0.0
  %1386 = vmatprep.subr.mxu0 0.0
  %1387 = vmatpush1.msra.mxu0 0.0
  %1388 = vmatprep.subr.mxu0 0.0
  %1389 = vmatpush1.msra.mxu0 0.0
  %1390 = vmatprep.subr.mxu0 0.0
  %1391 = vmatpush1.msra.mxu0 0.0
  %1392 = vmatprep.subr.mxu0 0.0
  %1393 = vmatpush1.msra.mxu0 0.0
  %1394 = vmatprep.subr.mxu0 0.0
  %1395 = vmatpush1.msra.mxu0 0.0
  %1396 = vmatprep.subr.mxu0 0.0
  %1397 = vmatpush1.msra.mxu0 0.0
  %1398 = vmatprep.subr.mxu0 0.0
  %1399 = vmatpush1.msra.mxu0 0.0
  %1400 = vmatprep.subr.mxu0 0.0
  %1401 = vmatpush1.msra.mxu0 0.0
  %1402 = vmatprep.subr.mxu0 0.0
  %1403 = vmatpush1.msra.mxu0 0.0
  %1404 = vmatprep.subr.mxu0 0.0
  %1405 = vmatpush1.msra.mxu0 0.0
  %1406 = vmatprep.subr.mxu0 0.0
  %1407 = vmatpush1.msra.mxu0 0.0
  %1408 = vmatprep.subr.mxu0 0.0
  %1409 = vmatpush1.msra.mxu0 0.0
  %1410 = vmatprep.subr.mxu0 0.0
  %1411 = vmatpush1.msra.mxu0 0.0
  %1412 = vmatprep.mubr.f32.mxu0 0.0
  %1413 = vmatmul.mubr.f32.gmra.mrb[0].mxu0 %v1346
  %v1414 = vpop.f32.mrb[0].mxu0
  %v1415 = vadd.f32 0.0, %v1414
  %v1416 = vpop.f32.mrb[0].mxu0
  %1417 = vdwg.mxu0
  %v1418 = vmul.f32 %v1415, 0.001953125
  %v1419 = vsel %vm369, 0.0, %v1418
  %vm1420 = vcmask 25600
  %v1421 = vsel %vm1420, %v1419, 0.0
  %v1422 = vrot.slane %v1421, 4
  %v1423 = vadd.f32 %v1421, %v1422
  %v1424 = vrot.slane %v1423, 2
  %v1425 = vadd.f32 %v1423, %v1424
  %v1426 = vrot.slane %v1425, 1
  %v1427 = vadd.f32 %v1425, %v1426
  %v1428 = vsel %vm369, %v1418, 0.0
  %v1429 = vsel %vm1420, %v1428, 0.0
  %v1430 = vrot.slane %v1429, 4
  %v1431 = vadd.f32 %v1429, %v1430
  %v1432 = vrot.slane %v1431, 2
  %v1433 = vadd.f32 %v1431, %v1432
  %v1434 = vrot.slane %v1433, 1
  %v1435 = vadd.f32 %v1433, %v1434
  %v1436 = vmul.f32 %v1427, %v1427
  %v1437 = vsub.f32 %v1435, %v1436
  %v1438 = vmax.f32 %v1437, 0.0
  %v1439 = vadd.f32 %v1438, 1e-05
  %v1440 = vrsqrt.pop %v1439
  %v1441 = vmul.f32 %v1303, %v1440
  %v1442 = vmul.f32 %v1427, %v1441
  %v1443 = vsub.f32 %v1304, %v1442
  %v1445 = vlaneseq
  %v1446 = vshrl.u32 %v1445, 7
  %v1447 = vsub.s32 0, %v1446
  %v1448 = vrot.slane %v1443, %v1447
  %v1451 = vlaneseq
  %v1452 = vshrl.u32 %v1451, 7
  %v1453 = vsub.s32 0, %v1452
  %v1454 = vrot.slane %v1441, %v1453
  %v1456 = vsel %vm369, %v1448, %v1454
  %vm1457 = vcmask 31744
  %v1459 = vsel %vm1457, %v1456, 0
  %vm1461 = vcmask 1043456
  %v1463 = vsel %vm1461, %v1313, 0
  %1465 = vmatprep.subr.mxu0 0.0
  %1466 = vmatpush1.msra.mxu0 %v1463
  %1467 = vmatprep.subr.mxu0 0.0
  %1468 = vmatpush1.msra.mxu0 0.0
  %1469 = vmatprep.subr.mxu0 0.0
  %1470 = vmatpush1.msra.mxu0 0.0
  %1471 = vmatprep.subr.mxu0 0.0
  %1472 = vmatpush1.msra.mxu0 0.0
  %1473 = vmatprep.subr.mxu0 0.0
  %1474 = vmatpush1.msra.mxu0 0.0
  %1475 = vmatprep.subr.mxu0 0.0
  %1476 = vmatpush1.msra.mxu0 0.0
  %1477 = vmatprep.subr.mxu0 0.0
  %1478 = vmatpush1.msra.mxu0 0.0
  %1479 = vmatprep.subr.mxu0 0.0
  %1480 = vmatpush1.msra.mxu0 0.0
  %1481 = vmatprep.subr.mxu0 0.0
  %1482 = vmatpush1.msra.mxu0 0.0
  %1483 = vmatprep.subr.mxu0 0.0
  %1484 = vmatpush1.msra.mxu0 0.0
  %1485 = vmatprep.subr.mxu0 0.0
  %1486 = vmatpush1.msra.mxu0 0.0
  %1487 = vmatprep.subr.mxu0 0.0
  %1488 = vmatpush1.msra.mxu0 0.0
  %1489 = vmatprep.subr.mxu0 0.0
  %1490 = vmatpush1.msra.mxu0 0.0
  %1491 = vmatprep.subr.mxu0 0.0
  %1492 = vmatpush1.msra.mxu0 0.0
  %1493 = vmatprep.subr.mxu0 0.0
  %1494 = vmatpush1.msra.mxu0 0.0
  %1495 = vmatprep.subr.mxu0 0.0
  %1496 = vmatpush1.msra.mxu0 0.0
  %1497 = vmatprep.subr.mxu0 0.0
  %1498 = vmatpush1.msra.mxu0 0.0
  %1499 = vmatprep.subr.mxu0 0.0
  %1500 = vmatpush1.msra.mxu0 0.0
  %1501 = vmatprep.subr.mxu0 0.0
  %1502 = vmatpush1.msra.mxu0 0.0
  %1503 = vmatprep.subr.mxu0 0.0
  %1504 = vmatpush1.msra.mxu0 0.0
  %1505 = vmatprep.subr.mxu0 0.0
  %1506 = vmatpush1.msra.mxu0 0.0
  %1507 = vmatprep.subr.mxu0 0.0
  %1508 = vmatpush1.msra.mxu0 0.0
  %1509 = vmatprep.subr.mxu0 0.0
  %1510 = vmatpush1.msra.mxu0 0.0
  %1511 = vmatprep.subr.mxu0 0.0
  %1512 = vmatpush1.msra.mxu0 0.0
  %1513 = vmatprep.subr.mxu0 0.0
  %1514 = vmatpush1.msra.mxu0 0.0
  %1515 = vmatprep.subr.mxu0 0.0
  %1516 = vmatpush1.msra.mxu0 0.0
  %1517 = vmatprep.subr.mxu0 0.0
  %1518 = vmatpush1.msra.mxu0 0.0
  %1519 = vmatprep.subr.mxu0 0.0
  %1520 = vmatpush1.msra.mxu0 0.0
  %1521 = vmatprep.subr.mxu0 0.0
  %1522 = vmatpush1.msra.mxu0 0.0
  %1523 = vmatprep.subr.mxu0 0.0
  %1524 = vmatpush1.msra.mxu0 0.0
  %1525 = vmatprep.subr.mxu0 0.0
  %1526 = vmatpush1.msra.mxu0 0.0
  %1527 = vmatprep.subr.mxu0 0.0
  %1528 = vmatpush1.msra.mxu0 0.0
  %1529 = vmatprep.mubr.f32.mxu0 0.0
  %1530 = vmatmul.mubr.f32.gmra.mrb[0].mxu0 %v1459
  %v1531 = vpop.f32.mrb[0].mxu0
  %v1532 = vadd.f32 0.0, %v1531
  %v1533 = vpop.f32.mrb[0].mxu0
  %1534 = vdwg.mxu0
  %v1535 = vsel %vm369, 0.0, %v1532
  %vm1536 = vcmask 517120
  %v1537 = vsel %vm1536, %v1535, 0.0
  %v1538 = vrot.slane %v1537, 4
  %v1539 = vadd.f32 %v1537, %v1538
  %v1540 = vrot.slane %v1539, 2
  %v1541 = vadd.f32 %v1539, %v1540
  %v1542 = vrot.slane %v1541, 1
  %v1543 = vadd.f32 %v1541, %v1542
  %v1544 = vsel %vm369, %v1532, 0.0
  %v1545 = vsel %vm1536, %v1544, 0.0
  %v1546 = vrot.slane %v1545, 4
  %v1547 = vadd.f32 %v1545, %v1546
  %v1548 = vrot.slane %v1547, 2
  %v1549 = vadd.f32 %v1547, %v1548
  %v1550 = vrot.slane %v1549, 1
  %v1551 = vadd.f32 %v1549, %v1550
  %v1552 = vmul.f32 %v1289, %v1543
  %v1553 = vmul.f32 %v1292, %v1543
  %v1554 = vmul.f32 %v1297, %v1543
  %v1555 = vmul.f32 %v1300, %v1543
  %v1556 = vadd.f32 %v1552, %v1551
  %v1557 = vadd.f32 %v1553, %v1551
  %v1558 = vadd.f32 %v1554, %v1551
  %v1559 = vadd.f32 %v1555, %v1551
  %1560 = vst.msk [vmem:[%s15] sm:$0xff] %vm137, %v1556
  %1561 = vst.msk [vmem:[%s15 + $0x8] sm:$0xff] %vm137, %v1557
  %1562 = vst.msk [vmem:[%s15 + $0x10] sm:$0xff] %vm137, %v1558
  %1563 = vst.msk [vmem:[%s15 + $0x18] sm:$0xff] %vm137, %v1559
  // Predicated region
  $region62: #{rn_conv_block.1} parent=0 // pred_check
    _
  $region63: #{rn_conv_block.1} parent=0 // pred_check_branch
    %1565 = sbr.rel (0) target = $region65
  $region64: #{rn_conv_block.1} parent=0 // pred_region
    _
  $region65: #{rn_conv_block.1} parent=0 // pred_fallthru
    _
  // Predicated region
  $region66: #{rn_conv_block.1} parent=0 // pred_check
    _
  $region67: #{rn_conv_block.1} parent=0 // pred_check_branch
    %1567 = sbr.rel (0) target = $region69
  $region68: #{rn_conv_block.1} parent=0 // pred_region
    _
  $region69: #{rn_conv_block.1} parent=0 // pred_fallthru
    _

</llo_original>
